<compile_context>
chip_gen: v5e
topology: v5e:2x2
jax: 0.10.0
libtpu: 0.0.40
codegen_flags: <defaults>
</compile_context>

<pallas_src>
import functools
import math

import jax
import jax.numpy as jnp
from jax import lax
from jax.experimental import pallas as pl
from jax.experimental.pallas import tpu as pltpu


def _liir_kernel(
    agent_ref, taps_ref, convw_ref, convb_ref,
    wfc1_ref, bfc1_ref,
    wih_ref, whh_ref, bih_ref, bhh_ref,
    wrin1a_ref, wrin1g_ref, brin1_ref,
    wheads_t_ref, bheads_ref,
    wvex_ref, bvex_ref,
    out_ref,
    *, T, KK, H,
):
    f32 = jnp.float32
    bf16 = jnp.bfloat16
    A = agent_ref.shape[0]

    # ---- agent_fc1 + relu : (A, S) @ (S, H) -> (A, H), bf16 operands ----
    ah = jnp.dot(agent_ref[...].astype(bf16), wfc1_ref[...],
                 preferred_element_type=f32) + bfc1_ref[...]
    ah = jnp.maximum(ah, 0.0)                               # (A, H) f32

    # ---- grid conv (1 in / 1 out channel, relu) ----
    # Taps were pre-shifted / pre-flattened wrapper-side into a lane-dense
    # (KK, T, Hc*Wc) slab -> KK whole-ref scalar FMAs, no slices, no reshape.
    acc = convw_ref[0] * taps_ref[0]                        # seed with tap 0
    for k in range(1, KK):
        acc = acc + convw_ref[k] * taps_ref[k]
    x = jnp.maximum(acc + convb_ref[0, 0], 0.0)             # (T, I) f32

    # ---- GRU over T steps, gate-fused weights [r | z | n] ----
    # Hoisted input projection: ONE (T, I) @ (I, 3H) bf16 matmul.
    x_proj = jnp.dot(x.astype(bf16), wih_ref[...],
                     preferred_element_type=f32) + bih_ref[...]            # (T, 3H)
    whh = whh_ref[...]                                      # (H, 3H) bf16
    bhh = bhh_ref[...]                                      # (1, 3H) f32

    # TODO(synk): hold whh resident in the MXU across steps with
    # pltpu.matmul_push_rhs / matmul_acc_lhs / matmul_pop (weight-stationary)
    # once verified in the bundle dump; jnp.dot re-pushes the RHS each step.
    h = jnp.zeros((1, H), f32)
    for t in range(T):                                      # statically unrolled (T small)
        xp = x_proj[t:t + 1, :]                             # (1, 3H) f32
        hp = jnp.dot(h.astype(bf16), whh, preferred_element_type=f32) + bhh  # (1, 3H)
        rz = jax.nn.sigmoid(xp[:, 0:2 * H] + hp[:, 0:2 * H])   # fused r|z -> one EUP push
        r = rz[:, 0:H]
        z = rz[:, H:2 * H]
        n = jnp.tanh(xp[:, 2 * H:3 * H] + r * hp[:, 2 * H:3 * H])
        h = (1.0 - z) * n + z * h
    # h == last GRU hidden state, shape (1, H) f32

    # ---- r_in_fc1 : cat([ah, tile(h)], -1) @ W  ==  ah @ Wa + h @ Wg ----
    r1 = (jnp.dot(ah.astype(bf16), wrin1a_ref[...], preferred_element_type=f32)
          + jnp.dot(h.astype(bf16), wrin1g_ref[...], preferred_element_type=f32)
          + brin1_ref[...])
    r1 = jnp.maximum(r1, 0.0)                               # (A, F) f32

    # ---- v_mix / r_in heads : VPU multiply + lane reduce (no N=2 MXU matmul) ----
    vmix = jnp.sum(r1 * wheads_t_ref[0:1, :], axis=1, keepdims=True) + bheads_ref[0, 0]
    rin_pre = jnp.sum(r1 * wheads_t_ref[1:2, :], axis=1, keepdims=True) + bheads_ref[0, 1]
    rin = jnp.tanh(rin_pre * 0.1) * 10.0                    # (A, 1)

    # ---- scaled dot-product attention (query = h, key = ah), all f32 ----
    inv_scale = jnp.float32(1.0 / math.sqrt(H))
    logits = jnp.sum(ah * h, axis=1, keepdims=True) * inv_scale         # (A, 1)
    m = jnp.max(logits, axis=0, keepdims=True)
    e = jnp.exp(logits - m)
    attn_w = e / jnp.sum(e, axis=0, keepdims=True)                      # (A, 1)
    attn_h = jnp.sum(attn_w * ah, axis=0, keepdims=True)                # (1, H)

    # ---- v_ex head : VPU multiply + lane reduce ----
    v_ex = (jnp.sum(h * wvex_ref[0:1, :] + attn_h * wvex_ref[1:2, :])
            + bvex_ref[0, 0])                               # scalar

    # ---- pack all outputs into one lane-dense (A, 128) block ----
    # lane 0 -> v_mix, lane 1 -> r_in, lane 2 -> v_ex (broadcast over rows)
    lane = lax.broadcasted_iota(jnp.int32, (A, 128), 1)
    out_ref[...] = jnp.where(
        lane == 0, vmix,
        jnp.where(lane == 1, rin,
                  jnp.where(lane == 2, v_ex, 0.0)))


def init_params(key, *, agent_state_size, hidden_size, K, conv_in, r_in_fc1_size):
    ks = jax.random.split(key, 12)

    def rn(k, shape, scale=0.1):
        return jax.random.normal(k, shape, jnp.float32) * scale

    H, F = hidden_size, r_in_fc1_size
    return dict(
        conv_w=rn(ks[0], (K, K)),
        conv_b=rn(ks[1], (1, 1)),
        w_fc1=rn(ks[2], (agent_state_size, H)),
        b_fc1=rn(ks[3], (1, H)),
        w_ih=rn(ks[4], (conv_in, 3 * H)),     # fused GRU input weights [r|z|n]
        w_hh=rn(ks[5], (H, 3 * H)),           # fused GRU hidden weights [r|z|n]
        b_ih=rn(ks[6], (1, 3 * H)),
        b_hh=rn(ks[7], (1, 3 * H)),
        w_rin1_a=rn(ks[8], (H, F)),           # r_in_fc1 weight, agent-hidden half
        w_rin1_g=rn(ks[9], (H, F)),           # r_in_fc1 weight, grid-hidden half
        b_rin1=jnp.zeros((1, F), jnp.float32),
        w_heads=rn(ks[10], (F, 2)),           # [:, 0] = v_mix head, [:, 1] = r_in head
        b_heads=jnp.zeros((1, 2), jnp.float32),
        w_vex=rn(ks[11], (2, H)),             # row 0 . h_last, row 1 . attn_h
        b_vex=jnp.zeros((1, 1), jnp.float32),
    )


def liir_critic_forward(params, agent_state, grid_state, *, K, stride, padding, H):
    A, _ = agent_state.shape
    T, Gh, Gw = grid_state.shape
    Hc = (Gh - K + 2 * padding) // stride + 1
    Wc = (Gw - K + 2 * padding) // stride + 1
    I = Hc * Wc

    # Wrapper-side im2col: zero-pad, then build the K*K pre-shifted,
    # pre-flattened taps (lane-dense (K*K, T, Hc*Wc)) so the kernel's conv is
    # pure whole-ref FMAs with no strided slices or reshapes.
    grid_pad = jnp.pad(grid_state, ((0, 0), (padding, padding), (padding, padding)))
    taps = jnp.stack([
        lax.slice(
            grid_pad,
            (0, di, dj),
            (T, di + (Hc - 1) * stride + 1, dj + (Wc - 1) * stride + 1),
            (1, stride, stride),
        ).reshape(T, I)
        for di in range(K) for dj in range(K)
    ], axis=0)                                              # (K*K, T, I)

    bf16 = jnp.bfloat16
    vmem = pl.BlockSpec(memory_space=pltpu.MemorySpace.VMEM)
    smem = pl.BlockSpec(memory_space=pltpu.MemorySpace.SMEM)

    kernel = functools.partial(_liir_kernel, T=T, KK=K * K, H=H)

    # TODO(synk): if this critic is ever evaluated over a batch of episodes, add
    # a leading "parallel" grid axis (block = 1 episode, constant index_map for
    # weights) so both v7x TensorCores are used and per-call overhead amortizes.
    packed = pl.pallas_call(
        kernel,
        out_shape=jax.ShapeDtypeStruct((A, 128), jnp.float32),
        in_specs=[
            vmem, vmem,              # agent_state, conv taps
            smem, smem,              # conv weight (flat) / bias (scalar-indexed)
            vmem, vmem,              # agent_fc1 weight (bf16) / bias
            vmem, vmem, vmem, vmem,  # fused GRU weights (bf16) / biases
            vmem, vmem, vmem,        # r_in_fc1 halves (bf16) / bias
            vmem, smem,              # fused heads weight (2, F) / biases (scalars)
            vmem, smem,              # v_ex weight (VPU path) / bias (scalar)
        ],
        out_specs=vmem,
    )(
        agent_state, taps,
        params['conv_w'].reshape(K * K), params['conv_b'],
        params['w_fc1'].astype(bf16), params['b_fc1'],
        params['w_ih'].astype(bf16), params['w_hh'].astype(bf16),
        params['b_ih'], params['b_hh'],
        params['w_rin1_a'].astype(bf16), params['w_rin1_g'].astype(bf16),
        params['b_rin1'],
        params['w_heads'].T, params['b_heads'],
        params['w_vex'], params['b_vex'],
    )

    v_mix = packed[:, 0]
    r_in = packed[:, 1]
    v_ex = packed[0:1, 2]
    return v_ex, v_mix, r_in


def liir_critic_reference(params, agent_state, grid_state, *, K, stride, padding, H):
    """Pure-JAX (XLA, f32 HIGHEST) reference of the same forward pass."""
    hi = lax.Precision.HIGHEST
    T = grid_state.shape[0]
    ah = jnp.maximum(
        jnp.dot(agent_state, params['w_fc1'], precision=hi) + params['b_fc1'], 0.0)
    conv = lax.conv_general_dilated(
        grid_state[:, None, :, :], params['conv_w'][None, None, :, :],
        window_strides=(stride, stride),
        padding=[(padding, padding), (padding, padding)],
        dimension_numbers=('NCHW', 'OIHW', 'NCHW'), precision=hi)
    conv = jnp.maximum(conv + params['conv_b'][0, 0], 0.0)
    x = conv.reshape(T, -1)
    h = jnp.zeros((1, H), jnp.float32)
    for t in range(T):
        xp = jnp.dot(x[t:t + 1], params['w_ih'], precision=hi) + params['b_ih']
        hp = jnp.dot(h, params['w_hh'], precision=hi) + params['b_hh']
        r = jax.nn.sigmoid(xp[:, :H] + hp[:, :H])
        z = jax.nn.sigmoid(xp[:, H:2 * H] + hp[:, H:2 * H])
        n = jnp.tanh(xp[:, 2 * H:] + r * hp[:, 2 * H:])
        h = (1.0 - z) * n + z * h
    r1 = jnp.maximum(
        jnp.dot(ah, params['w_rin1_a'], precision=hi)
        + jnp.dot(h, params['w_rin1_g'], precision=hi)
        + params['b_rin1'], 0.0)
    heads = jnp.dot(r1, params['w_heads'], precision=hi) + params['b_heads']
    v_mix = heads[:, 0]
    r_in = jnp.tanh(heads[:, 1] / 10.0) * 10.0
    logits = jnp.sum(ah * h, axis=1) / jnp.sqrt(jnp.float32(H))
    attn_w = jax.nn.softmax(logits, axis=0)[:, None]
    attn_h = jnp.sum(attn_w * ah, axis=0, keepdims=True)
    v_ex = (jnp.sum(h * params['w_vex'][0:1] + attn_h * params['w_vex'][1:2])
            + params['b_vex'][0, 0])
    return jnp.reshape(v_ex, (1,)), v_mix, r_in


if __name__ == "__main__":
    # critic_config (small, consistent with the module)
    agent_state_size = 16
    hidden_size = 32
    grid_height = grid_width = 16
    conv_kernel_size = 3
    stride = 1
    conv_padding = 1
    r_in_fc1_size = 32

    agent_nums = 8
    episode_len = 8

    Hc = (grid_height - conv_kernel_size + 2 * conv_padding) // stride + 1
    Wc = (grid_width - conv_kernel_size + 2 * conv_padding) // stride + 1

    key = jax.random.PRNGKey(0)
    kp, k1, k2 = jax.random.split(key, 3)

    params = init_params(
        kp,
        agent_state_size=agent_state_size,
        hidden_size=hidden_size,
        K=conv_kernel_size,
        conv_in=Hc * Wc,
        r_in_fc1_size=r_in_fc1_size,
    )

    agent_state = jax.random.normal(k1, (agent_nums, agent_state_size), jnp.float32)
    grid_state = jax.random.normal(k2, (episode_len, grid_height, grid_width), jnp.float32)

    v_ex, v_mix, r_in = liir_critic_forward(
        params, agent_state, grid_state,
        K=conv_kernel_size, stride=stride, padding=conv_padding, H=hidden_size)
    jax.block_until_ready((v_ex, v_mix, r_in))

    assert v_ex.shape == (1,)
    assert v_mix.shape == (agent_nums,)
    assert r_in.shape == (agent_nums,)

    # Validate against a pure-JAX f32 reference of the same forward pass.
    # (Kernel uses bf16 matmul operands with f32 accumulation -> 1e-2 tolerance.)
    v_ex_r, v_mix_r, r_in_r = liir_critic_reference(
        params, agent_state, grid_state,
        K=conv_kernel_size, stride=stride, padding=conv_padding, H=hidden_size)
    ok = (jnp.allclose(v_ex, v_ex_r, rtol=1e-2, atol=1e-2)
          & jnp.allclose(v_mix, v_mix_r, rtol=1e-2, atol=1e-2)
          & jnp.allclose(r_in, r_in_r, rtol=1e-2, atol=1e-2))
    assert bool(ok), "Pallas kernel disagrees with JAX reference"

    print("KERNEL_OK")
</pallas_src>

<mosaic_0001>
module attributes {stable_mosaic.version = 11 : i64} {
  func.func @_liir_kernel(%arg0: memref<8x16xf32, #tpu.memory_space<vmem>>, %arg1: memref<9x8x256xf32, #tpu.memory_space<vmem>>, %arg2: memref<9xf32, #tpu.memory_space<smem>>, %arg3: memref<1x1xf32, #tpu.memory_space<smem>>, %arg4: memref<16x32xbf16, #tpu.memory_space<vmem>>, %arg5: memref<1x32xf32, #tpu.memory_space<vmem>>, %arg6: memref<256x96xbf16, #tpu.memory_space<vmem>>, %arg7: memref<32x96xbf16, #tpu.memory_space<vmem>>, %arg8: memref<1x96xf32, #tpu.memory_space<vmem>>, %arg9: memref<1x96xf32, #tpu.memory_space<vmem>>, %arg10: memref<32x32xbf16, #tpu.memory_space<vmem>>, %arg11: memref<32x32xbf16, #tpu.memory_space<vmem>>, %arg12: memref<1x32xf32, #tpu.memory_space<vmem>>, %arg13: memref<2x32xf32, #tpu.memory_space<vmem>>, %arg14: memref<1x2xf32, #tpu.memory_space<smem>>, %arg15: memref<2x32xf32, #tpu.memory_space<vmem>>, %arg16: memref<1x1xf32, #tpu.memory_space<smem>>, %arg17: memref<8x128xf32, #tpu.memory_space<vmem>>) attributes {dimension_semantics = [], scalar_prefetch = 0 : i64, scratch_operands = 0 : i64, tpu.core_type = #tpu.core_type<tc>} {
    %c0 = arith.constant 0 : index
    %c0_0 = arith.constant 0 : index
    %0 = vector.load %arg0[%c0, %c0_0] : memref<8x16xf32, #tpu.memory_space<vmem>>, vector<8x16xf32>
    %1 = arith.truncf %0 : vector<8x16xf32> to vector<8x16xbf16>
    %c0_1 = arith.constant 0 : index
    %c0_2 = arith.constant 0 : index
    %2 = vector.load %arg4[%c0_1, %c0_2] : memref<16x32xbf16, #tpu.memory_space<vmem>>, vector<16x32xbf16>
    %cst = arith.constant dense<0.000000e+00> : vector<8x32xf32>
    %3 = tpu.matmul %1, %2, %cst {dimension_numbers = #tpu.dot_dimension_numbers<[1], [0], [0], [1], [0, 0, 1, 1], [], []>} : vector<8x16xbf16>, vector<16x32xbf16>, vector<8x32xf32> -> vector<8x32xf32>
    %c0_3 = arith.constant 0 : index
    %c0_4 = arith.constant 0 : index
    %4 = vector.load %arg5[%c0_3, %c0_4] : memref<1x32xf32, #tpu.memory_space<vmem>>, vector<1x32xf32>
    %5 = vector.broadcast %4 : vector<1x32xf32> to vector<8x32xf32>
    %6 = arith.addf %3, %5 : vector<8x32xf32>
    %cst_5 = arith.constant 0.000000e+00 : f32
    %7 = vector.broadcast %cst_5 : f32 to vector<8x32xf32>
    %8 = arith.maximumf %6, %7 : vector<8x32xf32>
    %c0_6 = arith.constant 0 : index
    %9 = memref.load %arg2[%c0_6] : memref<9xf32, #tpu.memory_space<smem>>
    %c0_7 = arith.constant 0 : index
    %c0_8 = arith.constant 0 : index
    %c0_9 = arith.constant 0 : index
    %10 = vector.load %arg1[%c0_7, %c0_8, %c0_9] : memref<9x8x256xf32, #tpu.memory_space<vmem>>, vector<1x8x256xf32>
    %11 = vector.shape_cast %10 : vector<1x8x256xf32> to vector<8x256xf32>
    %12 = vector.broadcast %9 : f32 to vector<8x256xf32>
    %13 = arith.mulf %12, %11 : vector<8x256xf32>
    %c1 = arith.constant 1 : index
    %14 = memref.load %arg2[%c1] : memref<9xf32, #tpu.memory_space<smem>>
    %c1_10 = arith.constant 1 : index
    %c0_11 = arith.constant 0 : index
    %c0_12 = arith.constant 0 : index
    %15 = vector.load %arg1[%c1_10, %c0_11, %c0_12] : memref<9x8x256xf32, #tpu.memory_space<vmem>>, vector<1x8x256xf32>
    %16 = vector.shape_cast %15 : vector<1x8x256xf32> to vector<8x256xf32>
    %17 = vector.broadcast %14 : f32 to vector<8x256xf32>
    %18 = arith.mulf %17, %16 : vector<8x256xf32>
    %19 = arith.addf %13, %18 : vector<8x256xf32>
    %c2 = arith.constant 2 : index
    %20 = memref.load %arg2[%c2] : memref<9xf32, #tpu.memory_space<smem>>
    %c2_13 = arith.constant 2 : index
    %c0_14 = arith.constant 0 : index
    %c0_15 = arith.constant 0 : index
    %21 = vector.load %arg1[%c2_13, %c0_14, %c0_15] : memref<9x8x256xf32, #tpu.memory_space<vmem>>, vector<1x8x256xf32>
    %22 = vector.shape_cast %21 : vector<1x8x256xf32> to vector<8x256xf32>
    %23 = vector.broadcast %20 : f32 to vector<8x256xf32>
    %24 = arith.mulf %23, %22 : vector<8x256xf32>
    %25 = arith.addf %19, %24 : vector<8x256xf32>
    %c3 = arith.constant 3 : index
    %26 = memref.load %arg2[%c3] : memref<9xf32, #tpu.memory_space<smem>>
    %c3_16 = arith.constant 3 : index
    %c0_17 = arith.constant 0 : index
    %c0_18 = arith.constant 0 : index
    %27 = vector.load %arg1[%c3_16, %c0_17, %c0_18] : memref<9x8x256xf32, #tpu.memory_space<vmem>>, vector<1x8x256xf32>
    %28 = vector.shape_cast %27 : vector<1x8x256xf32> to vector<8x256xf32>
    %29 = vector.broadcast %26 : f32 to vector<8x256xf32>
    %30 = arith.mulf %29, %28 : vector<8x256xf32>
    %31 = arith.addf %25, %30 : vector<8x256xf32>
    %c4 = arith.constant 4 : index
    %32 = memref.load %arg2[%c4] : memref<9xf32, #tpu.memory_space<smem>>
    %c4_19 = arith.constant 4 : index
    %c0_20 = arith.constant 0 : index
    %c0_21 = arith.constant 0 : index
    %33 = vector.load %arg1[%c4_19, %c0_20, %c0_21] : memref<9x8x256xf32, #tpu.memory_space<vmem>>, vector<1x8x256xf32>
    %34 = vector.shape_cast %33 : vector<1x8x256xf32> to vector<8x256xf32>
    %35 = vector.broadcast %32 : f32 to vector<8x256xf32>
    %36 = arith.mulf %35, %34 : vector<8x256xf32>
    %37 = arith.addf %31, %36 : vector<8x256xf32>
    %c5 = arith.constant 5 : index
    %38 = memref.load %arg2[%c5] : memref<9xf32, #tpu.memory_space<smem>>
    %c5_22 = arith.constant 5 : index
    %c0_23 = arith.constant 0 : index
    %c0_24 = arith.constant 0 : index
    %39 = vector.load %arg1[%c5_22, %c0_23, %c0_24] : memref<9x8x256xf32, #tpu.memory_space<vmem>>, vector<1x8x256xf32>
    %40 = vector.shape_cast %39 : vector<1x8x256xf32> to vector<8x256xf32>
    %41 = vector.broadcast %38 : f32 to vector<8x256xf32>
    %42 = arith.mulf %41, %40 : vector<8x256xf32>
    %43 = arith.addf %37, %42 : vector<8x256xf32>
    %c6 = arith.constant 6 : index
    %44 = memref.load %arg2[%c6] : memref<9xf32, #tpu.memory_space<smem>>
    %c6_25 = arith.constant 6 : index
    %c0_26 = arith.constant 0 : index
    %c0_27 = arith.constant 0 : index
    %45 = vector.load %arg1[%c6_25, %c0_26, %c0_27] : memref<9x8x256xf32, #tpu.memory_space<vmem>>, vector<1x8x256xf32>
    %46 = vector.shape_cast %45 : vector<1x8x256xf32> to vector<8x256xf32>
    %47 = vector.broadcast %44 : f32 to vector<8x256xf32>
    %48 = arith.mulf %47, %46 : vector<8x256xf32>
    %49 = arith.addf %43, %48 : vector<8x256xf32>
    %c7 = arith.constant 7 : index
    %50 = memref.load %arg2[%c7] : memref<9xf32, #tpu.memory_space<smem>>
    %c7_28 = arith.constant 7 : index
    %c0_29 = arith.constant 0 : index
    %c0_30 = arith.constant 0 : index
    %51 = vector.load %arg1[%c7_28, %c0_29, %c0_30] : memref<9x8x256xf32, #tpu.memory_space<vmem>>, vector<1x8x256xf32>
    %52 = vector.shape_cast %51 : vector<1x8x256xf32> to vector<8x256xf32>
    %53 = vector.broadcast %50 : f32 to vector<8x256xf32>
    %54 = arith.mulf %53, %52 : vector<8x256xf32>
    %55 = arith.addf %49, %54 : vector<8x256xf32>
    %c8 = arith.constant 8 : index
    %56 = memref.load %arg2[%c8] : memref<9xf32, #tpu.memory_space<smem>>
    %c8_31 = arith.constant 8 : index
    %c0_32 = arith.constant 0 : index
    %c0_33 = arith.constant 0 : index
    %57 = vector.load %arg1[%c8_31, %c0_32, %c0_33] : memref<9x8x256xf32, #tpu.memory_space<vmem>>, vector<1x8x256xf32>
    %58 = vector.shape_cast %57 : vector<1x8x256xf32> to vector<8x256xf32>
    %59 = vector.broadcast %56 : f32 to vector<8x256xf32>
    %60 = arith.mulf %59, %58 : vector<8x256xf32>
    %61 = arith.addf %55, %60 : vector<8x256xf32>
    %c0_34 = arith.constant 0 : index
    %c0_35 = arith.constant 0 : index
    %62 = memref.load %arg3[%c0_34, %c0_35] : memref<1x1xf32, #tpu.memory_space<smem>>
    %63 = vector.broadcast %62 : f32 to vector<8x256xf32>
    %64 = arith.addf %61, %63 : vector<8x256xf32>
    %cst_36 = arith.constant 0.000000e+00 : f32
    %65 = vector.broadcast %cst_36 : f32 to vector<8x256xf32>
    %66 = arith.maximumf %64, %65 : vector<8x256xf32>
    %67 = arith.truncf %66 : vector<8x256xf32> to vector<8x256xbf16>
    %c0_37 = arith.constant 0 : index
    %c0_38 = arith.constant 0 : index
    %68 = vector.load %arg6[%c0_37, %c0_38] : memref<256x96xbf16, #tpu.memory_space<vmem>>, vector<256x96xbf16>
    %cst_39 = arith.constant dense<0.000000e+00> : vector<8x96xf32>
    %69 = tpu.matmul %67, %68, %cst_39 {dimension_numbers = #tpu.dot_dimension_numbers<[1], [0], [0], [1], [0, 0, 1, 1], [], []>} : vector<8x256xbf16>, vector<256x96xbf16>, vector<8x96xf32> -> vector<8x96xf32>
    %c0_40 = arith.constant 0 : index
    %c0_41 = arith.constant 0 : index
    %70 = vector.load %arg8[%c0_40, %c0_41] : memref<1x96xf32, #tpu.memory_space<vmem>>, vector<1x96xf32>
    %71 = vector.broadcast %70 : vector<1x96xf32> to vector<8x96xf32>
    %72 = arith.addf %69, %71 : vector<8x96xf32>
    %c0_42 = arith.constant 0 : index
    %c0_43 = arith.constant 0 : index
    %73 = vector.load %arg7[%c0_42, %c0_43] : memref<32x96xbf16, #tpu.memory_space<vmem>>, vector<32x96xbf16>
    %c0_44 = arith.constant 0 : index
    %c0_45 = arith.constant 0 : index
    %74 = vector.load %arg9[%c0_44, %c0_45] : memref<1x96xf32, #tpu.memory_space<vmem>>, vector<1x96xf32>
    %cst_46 = arith.constant 0.000000e+00 : f32
    %75 = vector.broadcast %cst_46 : f32 to vector<1x32xf32>
    %76 = vector.extract_strided_slice %72 {offsets = [0, 0], sizes = [1, 96], strides = [1, 1]} : vector<8x96xf32> to vector<1x96xf32>
    %77 = arith.truncf %75 : vector<1x32xf32> to vector<1x32xbf16>
    %cst_47 = arith.constant dense<0.000000e+00> : vector<1x96xf32>
    %78 = tpu.matmul %77, %73, %cst_47 {dimension_numbers = #tpu.dot_dimension_numbers<[1], [0], [0], [1], [0, 0, 1, 1], [], []>} : vector<1x32xbf16>, vector<32x96xbf16>, vector<1x96xf32> -> vector<1x96xf32>
    %79 = arith.addf %78, %74 : vector<1x96xf32>
    %80 = vector.extract_strided_slice %76 {offsets = [0, 0], sizes = [1, 64], strides = [1, 1]} : vector<1x96xf32> to vector<1x64xf32>
    %81 = vector.extract_strided_slice %79 {offsets = [0, 0], sizes = [1, 64], strides = [1, 1]} : vector<1x96xf32> to vector<1x64xf32>
    %82 = arith.addf %80, %81 : vector<1x64xf32>
    %83 = arith.negf %82 : vector<1x64xf32>
    %84 = math.exp %83 : vector<1x64xf32>
    %cst_48 = arith.constant 1.000000e+00 : f32
    %85 = vector.broadcast %cst_48 : f32 to vector<1x64xf32>
    %86 = arith.addf %85, %84 : vector<1x64xf32>
    %87 = arith.divf %85, %86 : vector<1x64xf32>
    %88 = vector.extract_strided_slice %87 {offsets = [0, 0], sizes = [1, 32], strides = [1, 1]} : vector<1x64xf32> to vector<1x32xf32>
    %89 = vector.extract_strided_slice %87 {offsets = [0, 32], sizes = [1, 32], strides = [1, 1]} : vector<1x64xf32> to vector<1x32xf32>
    %90 = vector.extract_strided_slice %76 {offsets = [0, 64], sizes = [1, 32], strides = [1, 1]} : vector<1x96xf32> to vector<1x32xf32>
    %91 = vector.extract_strided_slice %79 {offsets = [0, 64], sizes = [1, 32], strides = [1, 1]} : vector<1x96xf32> to vector<1x32xf32>
    %92 = arith.mulf %88, %91 : vector<1x32xf32>
    %93 = arith.addf %90, %92 : vector<1x32xf32>
    %94 = math.tanh %93 : vector<1x32xf32>
    %cst_49 = arith.constant 1.000000e+00 : f32
    %95 = vector.broadcast %cst_49 : f32 to vector<1x32xf32>
    %96 = arith.subf %95, %89 : vector<1x32xf32>
    %97 = arith.mulf %96, %94 : vector<1x32xf32>
    %98 = arith.mulf %89, %75 : vector<1x32xf32>
    %99 = arith.addf %97, %98 : vector<1x32xf32>
    %100 = vector.extract_strided_slice %72 {offsets = [1, 0], sizes = [1, 96], strides = [1, 1]} : vector<8x96xf32> to vector<1x96xf32>
    %101 = arith.truncf %99 : vector<1x32xf32> to vector<1x32xbf16>
    %cst_50 = arith.constant dense<0.000000e+00> : vector<1x96xf32>
    %102 = tpu.matmul %101, %73, %cst_50 {dimension_numbers = #tpu.dot_dimension_numbers<[1], [0], [0], [1], [0, 0, 1, 1], [], []>} : vector<1x32xbf16>, vector<32x96xbf16>, vector<1x96xf32> -> vector<1x96xf32>
    %103 = arith.addf %102, %74 : vector<1x96xf32>
    %104 = vector.extract_strided_slice %100 {offsets = [0, 0], sizes = [1, 64], strides = [1, 1]} : vector<1x96xf32> to vector<1x64xf32>
    %105 = vector.extract_strided_slice %103 {offsets = [0, 0], sizes = [1, 64], strides = [1, 1]} : vector<1x96xf32> to vector<1x64xf32>
    %106 = arith.addf %104, %105 : vector<1x64xf32>
    %107 = arith.negf %106 : vector<1x64xf32>
    %108 = math.exp %107 : vector<1x64xf32>
    %cst_51 = arith.constant 1.000000e+00 : f32
    %109 = vector.broadcast %cst_51 : f32 to vector<1x64xf32>
    %110 = arith.addf %109, %108 : vector<1x64xf32>
    %111 = arith.divf %109, %110 : vector<1x64xf32>
    %112 = vector.extract_strided_slice %111 {offsets = [0, 0], sizes = [1, 32], strides = [1, 1]} : vector<1x64xf32> to vector<1x32xf32>
    %113 = vector.extract_strided_slice %111 {offsets = [0, 32], sizes = [1, 32], strides = [1, 1]} : vector<1x64xf32> to vector<1x32xf32>
    %114 = vector.extract_strided_slice %100 {offsets = [0, 64], sizes = [1, 32], strides = [1, 1]} : vector<1x96xf32> to vector<1x32xf32>
    %115 = vector.extract_strided_slice %103 {offsets = [0, 64], sizes = [1, 32], strides = [1, 1]} : vector<1x96xf32> to vector<1x32xf32>
    %116 = arith.mulf %112, %115 : vector<1x32xf32>
    %117 = arith.addf %114, %116 : vector<1x32xf32>
    %118 = math.tanh %117 : vector<1x32xf32>
    %cst_52 = arith.constant 1.000000e+00 : f32
    %119 = vector.broadcast %cst_52 : f32 to vector<1x32xf32>
    %120 = arith.subf %119, %113 : vector<1x32xf32>
    %121 = arith.mulf %120, %118 : vector<1x32xf32>
    %122 = arith.mulf %113, %99 : vector<1x32xf32>
    %123 = arith.addf %121, %122 : vector<1x32xf32>
    %124 = vector.extract_strided_slice %72 {offsets = [2, 0], sizes = [1, 96], strides = [1, 1]} : vector<8x96xf32> to vector<1x96xf32>
    %125 = arith.truncf %123 : vector<1x32xf32> to vector<1x32xbf16>
    %cst_53 = arith.constant dense<0.000000e+00> : vector<1x96xf32>
    %126 = tpu.matmul %125, %73, %cst_53 {dimension_numbers = #tpu.dot_dimension_numbers<[1], [0], [0], [1], [0, 0, 1, 1], [], []>} : vector<1x32xbf16>, vector<32x96xbf16>, vector<1x96xf32> -> vector<1x96xf32>
    %127 = arith.addf %126, %74 : vector<1x96xf32>
    %128 = vector.extract_strided_slice %124 {offsets = [0, 0], sizes = [1, 64], strides = [1, 1]} : vector<1x96xf32> to vector<1x64xf32>
    %129 = vector.extract_strided_slice %127 {offsets = [0, 0], sizes = [1, 64], strides = [1, 1]} : vector<1x96xf32> to vector<1x64xf32>
    %130 = arith.addf %128, %129 : vector<1x64xf32>
    %131 = arith.negf %130 : vector<1x64xf32>
    %132 = math.exp %131 : vector<1x64xf32>
    %cst_54 = arith.constant 1.000000e+00 : f32
    %133 = vector.broadcast %cst_54 : f32 to vector<1x64xf32>
    %134 = arith.addf %133, %132 : vector<1x64xf32>
    %135 = arith.divf %133, %134 : vector<1x64xf32>
    %136 = vector.extract_strided_slice %135 {offsets = [0, 0], sizes = [1, 32], strides = [1, 1]} : vector<1x64xf32> to vector<1x32xf32>
    %137 = vector.extract_strided_slice %135 {offsets = [0, 32], sizes = [1, 32], strides = [1, 1]} : vector<1x64xf32> to vector<1x32xf32>
    %138 = vector.extract_strided_slice %124 {offsets = [0, 64], sizes = [1, 32], strides = [1, 1]} : vector<1x96xf32> to vector<1x32xf32>
    %139 = vector.extract_strided_slice %127 {offsets = [0, 64], sizes = [1, 32], strides = [1, 1]} : vector<1x96xf32> to vector<1x32xf32>
    %140 = arith.mulf %136, %139 : vector<1x32xf32>
    %141 = arith.addf %138, %140 : vector<1x32xf32>
    %142 = math.tanh %141 : vector<1x32xf32>
    %cst_55 = arith.constant 1.000000e+00 : f32
    %143 = vector.broadcast %cst_55 : f32 to vector<1x32xf32>
    %144 = arith.subf %143, %137 : vector<1x32xf32>
    %145 = arith.mulf %144, %142 : vector<1x32xf32>
    %146 = arith.mulf %137, %123 : vector<1x32xf32>
    %147 = arith.addf %145, %146 : vector<1x32xf32>
    %148 = vector.extract_strided_slice %72 {offsets = [3, 0], sizes = [1, 96], strides = [1, 1]} : vector<8x96xf32> to vector<1x96xf32>
    %149 = arith.truncf %147 : vector<1x32xf32> to vector<1x32xbf16>
    %cst_56 = arith.constant dense<0.000000e+00> : vector<1x96xf32>
    %150 = tpu.matmul %149, %73, %cst_56 {dimension_numbers = #tpu.dot_dimension_numbers<[1], [0], [0], [1], [0, 0, 1, 1], [], []>} : vector<1x32xbf16>, vector<32x96xbf16>, vector<1x96xf32> -> vector<1x96xf32>
    %151 = arith.addf %150, %74 : vector<1x96xf32>
    %152 = vector.extract_strided_slice %148 {offsets = [0, 0], sizes = [1, 64], strides = [1, 1]} : vector<1x96xf32> to vector<1x64xf32>
    %153 = vector.extract_strided_slice %151 {offsets = [0, 0], sizes = [1, 64], strides = [1, 1]} : vector<1x96xf32> to vector<1x64xf32>
    %154 = arith.addf %152, %153 : vector<1x64xf32>
    %155 = arith.negf %154 : vector<1x64xf32>
    %156 = math.exp %155 : vector<1x64xf32>
    %cst_57 = arith.constant 1.000000e+00 : f32
    %157 = vector.broadcast %cst_57 : f32 to vector<1x64xf32>
    %158 = arith.addf %157, %156 : vector<1x64xf32>
    %159 = arith.divf %157, %158 : vector<1x64xf32>
    %160 = vector.extract_strided_slice %159 {offsets = [0, 0], sizes = [1, 32], strides = [1, 1]} : vector<1x64xf32> to vector<1x32xf32>
    %161 = vector.extract_strided_slice %159 {offsets = [0, 32], sizes = [1, 32], strides = [1, 1]} : vector<1x64xf32> to vector<1x32xf32>
    %162 = vector.extract_strided_slice %148 {offsets = [0, 64], sizes = [1, 32], strides = [1, 1]} : vector<1x96xf32> to vector<1x32xf32>
    %163 = vector.extract_strided_slice %151 {offsets = [0, 64], sizes = [1, 32], strides = [1, 1]} : vector<1x96xf32> to vector<1x32xf32>
    %164 = arith.mulf %160, %163 : vector<1x32xf32>
    %165 = arith.addf %162, %164 : vector<1x32xf32>
    %166 = math.tanh %165 : vector<1x32xf32>
    %cst_58 = arith.constant 1.000000e+00 : f32
    %167 = vector.broadcast %cst_58 : f32 to vector<1x32xf32>
    %168 = arith.subf %167, %161 : vector<1x32xf32>
    %169 = arith.mulf %168, %166 : vector<1x32xf32>
    %170 = arith.mulf %161, %147 : vector<1x32xf32>
    %171 = arith.addf %169, %170 : vector<1x32xf32>
    %172 = vector.extract_strided_slice %72 {offsets = [4, 0], sizes = [1, 96], strides = [1, 1]} : vector<8x96xf32> to vector<1x96xf32>
    %173 = arith.truncf %171 : vector<1x32xf32> to vector<1x32xbf16>
    %cst_59 = arith.constant dense<0.000000e+00> : vector<1x96xf32>
    %174 = tpu.matmul %173, %73, %cst_59 {dimension_numbers = #tpu.dot_dimension_numbers<[1], [0], [0], [1], [0, 0, 1, 1], [], []>} : vector<1x32xbf16>, vector<32x96xbf16>, vector<1x96xf32> -> vector<1x96xf32>
    %175 = arith.addf %174, %74 : vector<1x96xf32>
    %176 = vector.extract_strided_slice %172 {offsets = [0, 0], sizes = [1, 64], strides = [1, 1]} : vector<1x96xf32> to vector<1x64xf32>
    %177 = vector.extract_strided_slice %175 {offsets = [0, 0], sizes = [1, 64], strides = [1, 1]} : vector<1x96xf32> to vector<1x64xf32>
    %178 = arith.addf %176, %177 : vector<1x64xf32>
    %179 = arith.negf %178 : vector<1x64xf32>
    %180 = math.exp %179 : vector<1x64xf32>
    %cst_60 = arith.constant 1.000000e+00 : f32
    %181 = vector.broadcast %cst_60 : f32 to vector<1x64xf32>
    %182 = arith.addf %181, %180 : vector<1x64xf32>
    %183 = arith.divf %181, %182 : vector<1x64xf32>
    %184 = vector.extract_strided_slice %183 {offsets = [0, 0], sizes = [1, 32], strides = [1, 1]} : vector<1x64xf32> to vector<1x32xf32>
    %185 = vector.extract_strided_slice %183 {offsets = [0, 32], sizes = [1, 32], strides = [1, 1]} : vector<1x64xf32> to vector<1x32xf32>
    %186 = vector.extract_strided_slice %172 {offsets = [0, 64], sizes = [1, 32], strides = [1, 1]} : vector<1x96xf32> to vector<1x32xf32>
    %187 = vector.extract_strided_slice %175 {offsets = [0, 64], sizes = [1, 32], strides = [1, 1]} : vector<1x96xf32> to vector<1x32xf32>
    %188 = arith.mulf %184, %187 : vector<1x32xf32>
    %189 = arith.addf %186, %188 : vector<1x32xf32>
    %190 = math.tanh %189 : vector<1x32xf32>
    %cst_61 = arith.constant 1.000000e+00 : f32
    %191 = vector.broadcast %cst_61 : f32 to vector<1x32xf32>
    %192 = arith.subf %191, %185 : vector<1x32xf32>
    %193 = arith.mulf %192, %190 : vector<1x32xf32>
    %194 = arith.mulf %185, %171 : vector<1x32xf32>
    %195 = arith.addf %193, %194 : vector<1x32xf32>
    %196 = vector.extract_strided_slice %72 {offsets = [5, 0], sizes = [1, 96], strides = [1, 1]} : vector<8x96xf32> to vector<1x96xf32>
    %197 = arith.truncf %195 : vector<1x32xf32> to vector<1x32xbf16>
    %cst_62 = arith.constant dense<0.000000e+00> : vector<1x96xf32>
    %198 = tpu.matmul %197, %73, %cst_62 {dimension_numbers = #tpu.dot_dimension_numbers<[1], [0], [0], [1], [0, 0, 1, 1], [], []>} : vector<1x32xbf16>, vector<32x96xbf16>, vector<1x96xf32> -> vector<1x96xf32>
    %199 = arith.addf %198, %74 : vector<1x96xf32>
    %200 = vector.extract_strided_slice %196 {offsets = [0, 0], sizes = [1, 64], strides = [1, 1]} : vector<1x96xf32> to vector<1x64xf32>
    %201 = vector.extract_strided_slice %199 {offsets = [0, 0], sizes = [1, 64], strides = [1, 1]} : vector<1x96xf32> to vector<1x64xf32>
    %202 = arith.addf %200, %201 : vector<1x64xf32>
    %203 = arith.negf %202 : vector<1x64xf32>
    %204 = math.exp %203 : vector<1x64xf32>
    %cst_63 = arith.constant 1.000000e+00 : f32
    %205 = vector.broadcast %cst_63 : f32 to vector<1x64xf32>
    %206 = arith.addf %205, %204 : vector<1x64xf32>
    %207 = arith.divf %205, %206 : vector<1x64xf32>
    %208 = vector.extract_strided_slice %207 {offsets = [0, 0], sizes = [1, 32], strides = [1, 1]} : vector<1x64xf32> to vector<1x32xf32>
    %209 = vector.extract_strided_slice %207 {offsets = [0, 32], sizes = [1, 32], strides = [1, 1]} : vector<1x64xf32> to vector<1x32xf32>
    %210 = vector.extract_strided_slice %196 {offsets = [0, 64], sizes = [1, 32], strides = [1, 1]} : vector<1x96xf32> to vector<1x32xf32>
    %211 = vector.extract_strided_slice %199 {offsets = [0, 64], sizes = [1, 32], strides = [1, 1]} : vector<1x96xf32> to vector<1x32xf32>
    %212 = arith.mulf %208, %211 : vector<1x32xf32>
    %213 = arith.addf %210, %212 : vector<1x32xf32>
    %214 = math.tanh %213 : vector<1x32xf32>
    %cst_64 = arith.constant 1.000000e+00 : f32
    %215 = vector.broadcast %cst_64 : f32 to vector<1x32xf32>
    %216 = arith.subf %215, %209 : vector<1x32xf32>
    %217 = arith.mulf %216, %214 : vector<1x32xf32>
    %218 = arith.mulf %209, %195 : vector<1x32xf32>
    %219 = arith.addf %217, %218 : vector<1x32xf32>
    %220 = vector.extract_strided_slice %72 {offsets = [6, 0], sizes = [1, 96], strides = [1, 1]} : vector<8x96xf32> to vector<1x96xf32>
    %221 = arith.truncf %219 : vector<1x32xf32> to vector<1x32xbf16>
    %cst_65 = arith.constant dense<0.000000e+00> : vector<1x96xf32>
    %222 = tpu.matmul %221, %73, %cst_65 {dimension_numbers = #tpu.dot_dimension_numbers<[1], [0], [0], [1], [0, 0, 1, 1], [], []>} : vector<1x32xbf16>, vector<32x96xbf16>, vector<1x96xf32> -> vector<1x96xf32>
    %223 = arith.addf %222, %74 : vector<1x96xf32>
    %224 = vector.extract_strided_slice %220 {offsets = [0, 0], sizes = [1, 64], strides = [1, 1]} : vector<1x96xf32> to vector<1x64xf32>
    %225 = vector.extract_strided_slice %223 {offsets = [0, 0], sizes = [1, 64], strides = [1, 1]} : vector<1x96xf32> to vector<1x64xf32>
    %226 = arith.addf %224, %225 : vector<1x64xf32>
    %227 = arith.negf %226 : vector<1x64xf32>
    %228 = math.exp %227 : vector<1x64xf32>
    %cst_66 = arith.constant 1.000000e+00 : f32
    %229 = vector.broadcast %cst_66 : f32 to vector<1x64xf32>
    %230 = arith.addf %229, %228 : vector<1x64xf32>
    %231 = arith.divf %229, %230 : vector<1x64xf32>
    %232 = vector.extract_strided_slice %231 {offsets = [0, 0], sizes = [1, 32], strides = [1, 1]} : vector<1x64xf32> to vector<1x32xf32>
    %233 = vector.extract_strided_slice %231 {offsets = [0, 32], sizes = [1, 32], strides = [1, 1]} : vector<1x64xf32> to vector<1x32xf32>
    %234 = vector.extract_strided_slice %220 {offsets = [0, 64], sizes = [1, 32], strides = [1, 1]} : vector<1x96xf32> to vector<1x32xf32>
    %235 = vector.extract_strided_slice %223 {offsets = [0, 64], sizes = [1, 32], strides = [1, 1]} : vector<1x96xf32> to vector<1x32xf32>
    %236 = arith.mulf %232, %235 : vector<1x32xf32>
    %237 = arith.addf %234, %236 : vector<1x32xf32>
    %238 = math.tanh %237 : vector<1x32xf32>
    %cst_67 = arith.constant 1.000000e+00 : f32
    %239 = vector.broadcast %cst_67 : f32 to vector<1x32xf32>
    %240 = arith.subf %239, %233 : vector<1x32xf32>
    %241 = arith.mulf %240, %238 : vector<1x32xf32>
    %242 = arith.mulf %233, %219 : vector<1x32xf32>
    %243 = arith.addf %241, %242 : vector<1x32xf32>
    %244 = vector.extract_strided_slice %72 {offsets = [7, 0], sizes = [1, 96], strides = [1, 1]} : vector<8x96xf32> to vector<1x96xf32>
    %245 = arith.truncf %243 : vector<1x32xf32> to vector<1x32xbf16>
    %cst_68 = arith.constant dense<0.000000e+00> : vector<1x96xf32>
    %246 = tpu.matmul %245, %73, %cst_68 {dimension_numbers = #tpu.dot_dimension_numbers<[1], [0], [0], [1], [0, 0, 1, 1], [], []>} : vector<1x32xbf16>, vector<32x96xbf16>, vector<1x96xf32> -> vector<1x96xf32>
    %247 = arith.addf %246, %74 : vector<1x96xf32>
    %248 = vector.extract_strided_slice %244 {offsets = [0, 0], sizes = [1, 64], strides = [1, 1]} : vector<1x96xf32> to vector<1x64xf32>
    %249 = vector.extract_strided_slice %247 {offsets = [0, 0], sizes = [1, 64], strides = [1, 1]} : vector<1x96xf32> to vector<1x64xf32>
    %250 = arith.addf %248, %249 : vector<1x64xf32>
    %251 = arith.negf %250 : vector<1x64xf32>
    %252 = math.exp %251 : vector<1x64xf32>
    %cst_69 = arith.constant 1.000000e+00 : f32
    %253 = vector.broadcast %cst_69 : f32 to vector<1x64xf32>
    %254 = arith.addf %253, %252 : vector<1x64xf32>
    %255 = arith.divf %253, %254 : vector<1x64xf32>
    %256 = vector.extract_strided_slice %255 {offsets = [0, 0], sizes = [1, 32], strides = [1, 1]} : vector<1x64xf32> to vector<1x32xf32>
    %257 = vector.extract_strided_slice %255 {offsets = [0, 32], sizes = [1, 32], strides = [1, 1]} : vector<1x64xf32> to vector<1x32xf32>
    %258 = vector.extract_strided_slice %244 {offsets = [0, 64], sizes = [1, 32], strides = [1, 1]} : vector<1x96xf32> to vector<1x32xf32>
    %259 = vector.extract_strided_slice %247 {offsets = [0, 64], sizes = [1, 32], strides = [1, 1]} : vector<1x96xf32> to vector<1x32xf32>
    %260 = arith.mulf %256, %259 : vector<1x32xf32>
    %261 = arith.addf %258, %260 : vector<1x32xf32>
    %262 = math.tanh %261 : vector<1x32xf32>
    %cst_70 = arith.constant 1.000000e+00 : f32
    %263 = vector.broadcast %cst_70 : f32 to vector<1x32xf32>
    %264 = arith.subf %263, %257 : vector<1x32xf32>
    %265 = arith.mulf %264, %262 : vector<1x32xf32>
    %266 = arith.mulf %257, %243 : vector<1x32xf32>
    %267 = arith.addf %265, %266 : vector<1x32xf32>
    %268 = arith.truncf %8 : vector<8x32xf32> to vector<8x32xbf16>
    %c0_71 = arith.constant 0 : index
    %c0_72 = arith.constant 0 : index
    %269 = vector.load %arg10[%c0_71, %c0_72] : memref<32x32xbf16, #tpu.memory_space<vmem>>, vector<32x32xbf16>
    %cst_73 = arith.constant dense<0.000000e+00> : vector<8x32xf32>
    %270 = tpu.matmul %268, %269, %cst_73 {dimension_numbers = #tpu.dot_dimension_numbers<[1], [0], [0], [1], [0, 0, 1, 1], [], []>} : vector<8x32xbf16>, vector<32x32xbf16>, vector<8x32xf32> -> vector<8x32xf32>
    %271 = arith.truncf %267 : vector<1x32xf32> to vector<1x32xbf16>
    %c0_74 = arith.constant 0 : index
    %c0_75 = arith.constant 0 : index
    %272 = vector.load %arg11[%c0_74, %c0_75] : memref<32x32xbf16, #tpu.memory_space<vmem>>, vector<32x32xbf16>
    %cst_76 = arith.constant dense<0.000000e+00> : vector<1x32xf32>
    %273 = tpu.matmul %271, %272, %cst_76 {dimension_numbers = #tpu.dot_dimension_numbers<[1], [0], [0], [1], [0, 0, 1, 1], [], []>} : vector<1x32xbf16>, vector<32x32xbf16>, vector<1x32xf32> -> vector<1x32xf32>
    %274 = vector.broadcast %273 : vector<1x32xf32> to vector<8x32xf32>
    %275 = arith.addf %270, %274 : vector<8x32xf32>
    %c0_77 = arith.constant 0 : index
    %c0_78 = arith.constant 0 : index
    %276 = vector.load %arg12[%c0_77, %c0_78] : memref<1x32xf32, #tpu.memory_space<vmem>>, vector<1x32xf32>
    %277 = vector.broadcast %276 : vector<1x32xf32> to vector<8x32xf32>
    %278 = arith.addf %275, %277 : vector<8x32xf32>
    %cst_79 = arith.constant 0.000000e+00 : f32
    %279 = vector.broadcast %cst_79 : f32 to vector<8x32xf32>
    %280 = arith.maximumf %278, %279 : vector<8x32xf32>
    %c0_80 = arith.constant 0 : index
    %c0_81 = arith.constant 0 : index
    %281 = vector.load %arg13[%c0_80, %c0_81] : memref<2x32xf32, #tpu.memory_space<vmem>>, vector<1x32xf32>
    %282 = vector.broadcast %281 : vector<1x32xf32> to vector<8x32xf32>
    %283 = arith.mulf %280, %282 : vector<8x32xf32>
    %cst_82 = arith.constant dense<0.000000e+00> : vector<8xf32>
    %284 = vector.multi_reduction <add>, %283, %cst_82 [1] : vector<8x32xf32> to vector<8xf32>
    %285 = vector.shape_cast %284 : vector<8xf32> to vector<8x1xf32>
    %c0_83 = arith.constant 0 : index
    %c0_84 = arith.constant 0 : index
    %286 = memref.load %arg14[%c0_83, %c0_84] : memref<1x2xf32, #tpu.memory_space<smem>>
    %287 = vector.broadcast %286 : f32 to vector<8x1xf32>
    %288 = arith.addf %285, %287 : vector<8x1xf32>
    %c1_85 = arith.constant 1 : index
    %c0_86 = arith.constant 0 : index
    %289 = vector.load %arg13[%c1_85, %c0_86] : memref<2x32xf32, #tpu.memory_space<vmem>>, vector<1x32xf32>
    %290 = vector.broadcast %289 : vector<1x32xf32> to vector<8x32xf32>
    %291 = arith.mulf %280, %290 : vector<8x32xf32>
    %cst_87 = arith.constant dense<0.000000e+00> : vector<8xf32>
    %292 = vector.multi_reduction <add>, %291, %cst_87 [1] : vector<8x32xf32> to vector<8xf32>
    %293 = vector.shape_cast %292 : vector<8xf32> to vector<8x1xf32>
    %c0_88 = arith.constant 0 : index
    %c1_89 = arith.constant 1 : index
    %294 = memref.load %arg14[%c0_88, %c1_89] : memref<1x2xf32, #tpu.memory_space<smem>>
    %295 = vector.broadcast %294 : f32 to vector<8x1xf32>
    %296 = arith.addf %293, %295 : vector<8x1xf32>
    %cst_90 = arith.constant 1.000000e-01 : f32
    %297 = vector.broadcast %cst_90 : f32 to vector<8x1xf32>
    %298 = arith.mulf %296, %297 : vector<8x1xf32>
    %299 = math.tanh %298 : vector<8x1xf32>
    %cst_91 = arith.constant 1.000000e+01 : f32
    %300 = vector.broadcast %cst_91 : f32 to vector<8x1xf32>
    %301 = arith.mulf %299, %300 : vector<8x1xf32>
    %302 = vector.broadcast %267 : vector<1x32xf32> to vector<8x32xf32>
    %303 = arith.mulf %8, %302 : vector<8x32xf32>
    %cst_92 = arith.constant dense<0.000000e+00> : vector<8xf32>
    %304 = vector.multi_reduction <add>, %303, %cst_92 [1] : vector<8x32xf32> to vector<8xf32>
    %305 = vector.shape_cast %304 : vector<8xf32> to vector<8x1xf32>
    %cst_93 = arith.constant 0.176776692 : f32
    %306 = vector.broadcast %cst_93 : f32 to vector<8x1xf32>
    %307 = arith.mulf %305, %306 : vector<8x1xf32>
    %cst_94 = arith.constant dense<0xFF800000> : vector<1xf32>
    %308 = vector.multi_reduction <maximumf>, %307, %cst_94 [0] : vector<8x1xf32> to vector<1xf32>
    %309 = vector.shape_cast %308 : vector<1xf32> to vector<1x1xf32>
    %310 = vector.broadcast %309 : vector<1x1xf32> to vector<8x1xf32>
    %311 = arith.subf %307, %310 : vector<8x1xf32>
    %312 = math.exp %311 : vector<8x1xf32>
    %cst_95 = arith.constant dense<0.000000e+00> : vector<1xf32>
    %313 = vector.multi_reduction <add>, %312, %cst_95 [0] : vector<8x1xf32> to vector<1xf32>
    %314 = vector.shape_cast %313 : vector<1xf32> to vector<1x1xf32>
    %315 = vector.broadcast %314 : vector<1x1xf32> to vector<8x1xf32>
    %316 = arith.divf %312, %315 : vector<8x1xf32>
    %317 = vector.broadcast %316 : vector<8x1xf32> to vector<8x32xf32>
    %318 = arith.mulf %317, %8 : vector<8x32xf32>
    %cst_96 = arith.constant dense<0.000000e+00> : vector<32xf32>
    %319 = vector.multi_reduction <add>, %318, %cst_96 [0] : vector<8x32xf32> to vector<32xf32>
    %320 = vector.shape_cast %319 : vector<32xf32> to vector<1x32xf32>
    %c0_97 = arith.constant 0 : index
    %c0_98 = arith.constant 0 : index
    %321 = vector.load %arg15[%c0_97, %c0_98] : memref<2x32xf32, #tpu.memory_space<vmem>>, vector<1x32xf32>
    %322 = arith.mulf %267, %321 : vector<1x32xf32>
    %c1_99 = arith.constant 1 : index
    %c0_100 = arith.constant 0 : index
    %323 = vector.load %arg15[%c1_99, %c0_100] : memref<2x32xf32, #tpu.memory_space<vmem>>, vector<1x32xf32>
    %324 = arith.mulf %320, %323 : vector<1x32xf32>
    %325 = arith.addf %322, %324 : vector<1x32xf32>
    %326 = vector.shape_cast %325 : vector<1x32xf32> to vector<1x1x32xf32>
    %cst_101 = arith.constant dense<0.000000e+00> : vector<1xf32>
    %327 = vector.multi_reduction <add>, %326, %cst_101 [1, 2] : vector<1x1x32xf32> to vector<1xf32>
    %328 = vector.shape_cast %327 : vector<1xf32> to vector<1x1x1xf32>
    %329 = vector.extract %328[0, 0, 0] : f32 from vector<1x1x1xf32>
    %c0_102 = arith.constant 0 : index
    %c0_103 = arith.constant 0 : index
    %330 = memref.load %arg16[%c0_102, %c0_103] : memref<1x1xf32, #tpu.memory_space<smem>>
    %331 = arith.addf %329, %330 : f32
    %332 = tpu.iota {dimensions = array<i32: 1>} : vector<8x128xi32>
    %c0_i32 = arith.constant 0 : i32
    %333 = vector.broadcast %c0_i32 : i32 to vector<8x128xi32>
    %334 = arith.cmpi eq, %332, %333 : vector<8x128xi32>
    %c1_i32 = arith.constant 1 : i32
    %335 = vector.broadcast %c1_i32 : i32 to vector<8x128xi32>
    %336 = arith.cmpi eq, %332, %335 : vector<8x128xi32>
    %c2_i32 = arith.constant 2 : i32
    %337 = vector.broadcast %c2_i32 : i32 to vector<8x128xi32>
    %338 = arith.cmpi eq, %332, %337 : vector<8x128xi32>
    %cst_104 = arith.constant 0.000000e+00 : f32
    %339 = vector.broadcast %331 : f32 to vector<8x128xf32>
    %340 = vector.broadcast %cst_104 : f32 to vector<8x128xf32>
    %341 = arith.select %338, %339, %340 : vector<8x128xi1>, vector<8x128xf32>
    %342 = vector.shape_cast %301 : vector<8x1xf32> to vector<8x1xf32>
    %343 = vector.broadcast %342 : vector<8x1xf32> to vector<8x128xf32>
    %344 = arith.select %336, %343, %341 : vector<8x128xi1>, vector<8x128xf32>
    %345 = vector.shape_cast %288 : vector<8x1xf32> to vector<8x1xf32>
    %346 = vector.broadcast %345 : vector<8x1xf32> to vector<8x128xf32>
    %347 = arith.select %334, %346, %344 : vector<8x128xi1>, vector<8x128xf32>
    %c0_105 = arith.constant 0 : index
    %c0_106 = arith.constant 0 : index
    %348 = vector.load %arg17[%c0_105, %c0_106] : memref<8x128xf32, #tpu.memory_space<vmem>>, vector<8x128xf32>
    tpu.vector_store %arg17[%c0_105, %c0_106], %347 {strides = array<i32>} : memref<8x128xf32, #tpu.memory_space<vmem>>, vector<8x128xf32>,
    return
  }
}

</mosaic_0001>

<llo_original>
// kernel: tpu_custom_call.1
$region0: #{tpu_custom_call.1}
  #allocation0 [shape = 'u32[]', space=smem, size = 0x4, offset = 0x4, fixed_abs, tag = 'smem constant byte address 0x4 - core index']
  #allocation1 [shape = 'u32[72,128]{1,0:T(1,128)}', space=vmem, size = 0x9000, scoped, tag = 'internal scratch']
  #allocation2 [shape = 'f32[1,1]{1,0:T(1,128)S(6)}', space=smem, size = 0x200, scoped, tag = 'scoped memory for tpu_custom_call.1']
  #allocation3 [shape = 'f32[1,1]{1,0:T(1,128)S(6)}', space=smem, size = 0x200, scoped, tag = 'scoped memory for tpu_custom_call.1']
  %s0 = inlined_call_operand.vmem [shape: f32[8,16], index: 0, kind: input, shape index: {}]
  %s1 = inlined_call_operand.vmem [shape: f32[9,8,256], index: 1, kind: input, shape index: {}]
  %s2 = inlined_call_operand.vmem [shape: f32[9], index: 2, kind: input, shape index: {}]
  %s3 = inlined_call_operand.<no memory space> [shape: f32[1,1], index: 3, kind: input, shape index: {}]
  %s4 = inlined_call_operand.vmem [shape: bf16[16,32], index: 4, kind: input, shape index: {}]
  %s5 = inlined_call_operand.vmem [shape: f32[1,32], index: 5, kind: input, shape index: {}]
  %s6 = inlined_call_operand.vmem [shape: bf16[256,96], index: 6, kind: input, shape index: {}]
  %s7 = inlined_call_operand.vmem [shape: bf16[32,96], index: 7, kind: input, shape index: {}]
  %s8 = inlined_call_operand.vmem [shape: f32[1,96], index: 8, kind: input, shape index: {}]
  %s9 = inlined_call_operand.vmem [shape: f32[1,96], index: 9, kind: input, shape index: {}]
  %s10 = inlined_call_operand.vmem [shape: bf16[32,32], index: 10, kind: input, shape index: {}]
  %s11 = inlined_call_operand.vmem [shape: bf16[32,32], index: 11, kind: input, shape index: {}]
  %s12 = inlined_call_operand.vmem [shape: f32[1,32], index: 12, kind: input, shape index: {}]
  %s13 = inlined_call_operand.vmem [shape: f32[2,32], index: 13, kind: input, shape index: {}]
  %s14 = inlined_call_operand.vmem [shape: f32[1,2], index: 14, kind: input, shape index: {}]
  %s15 = inlined_call_operand.vmem [shape: f32[2,32], index: 15, kind: input, shape index: {}]
  %s16 = inlined_call_operand.<no memory space> [shape: f32[1,1], index: 16, kind: input, shape index: {}]
  %s17 = inlined_call_operand.hbm [shape: f32[8,128], index: 17, kind: output, shape index: {}]
  %s18 = sld [smem:[#allocation0]]
  $region86: #{tpu_custom_call.1} parent=0
    _
  %s20 = ssub.s32 1, %s18
  %s21 = scalar_select 0, %s20, %s18
  %22 = sst [smem:[#allocation2]] %s3
  %23 = sst [smem:[#allocation3]] %s16
  $region1: #{tpu_custom_call.1} parent=0
    #allocation4 [shape = 'u8[512]{0}', space=smem, size = 0x200, scoped, tag = 'input window, operand 2, single buffered']
    #allocation5 [shape = 's32[1]{0}', space=sflag, size = 0x4, scoped, tag = 'scoped memory for tpu_custom_call.1']
    #allocation6 [shape = 's32[1]{0}', space=sflag, size = 0x4, scoped, tag = 'scoped memory for tpu_custom_call.1']
    #allocation7 [shape = 'u8[512]{0}', space=smem, size = 0x200, scoped, tag = 'input window, operand 14, single buffered']
    #allocation8 [shape = 's32[1]{0}', space=sflag, size = 0x4, scoped, tag = 'scoped memory for tpu_custom_call.1']
    #allocation9 [shape = 'u8[4096]{0}', space=vmem, size = 0x1000, scoped, tag = 'output window, operand 0, single buffered']
    %24 = vsyncpa [#allocation6], 0
    %25 = vsyncpa [#allocation8], 0
    %26 = vsyncpa [#allocation5], 0
    // Predicated region
    $region2: #{tpu_custom_call.1} parent=1 // pred_check
      _
    $region3: #{tpu_custom_call.1} parent=1 // pred_check_branch
      %28 = sbr.rel (0) target = $region5
    $region4: #{tpu_custom_call.1} parent=1 // pred_region
      _
    $region5: #{tpu_custom_call.1} parent=1 // pred_fallthru
      _
    // Predicated region
    $region6: #{tpu_custom_call.1} parent=1 // pred_check
      _
    $region7: #{tpu_custom_call.1} parent=1 // pred_check_branch
      %30 = sbr.rel (0) target = $region9
    $region8: #{tpu_custom_call.1} parent=1 // pred_region
      _
    $region9: #{tpu_custom_call.1} parent=1 // pred_fallthru
      _
    // Predicated region
    $region10: #{tpu_custom_call.1} parent=1 // pred_check
      _
    $region11: #{tpu_custom_call.1} parent=1 // pred_check_branch
      %32 = sbr.rel (0) target = $region13
    $region12: #{tpu_custom_call.1} parent=1 // pred_region
      %34 = vsyncadd [#allocation6], 0
      %s36 = sshll.u32 %s2, 4
      %s37 = int_to_ptr.vmem [resolvable:$true] %s36
      %39 = dma.vmem_to_smem %s37, 16, [#allocation4], [#allocation6]
    $region13: #{tpu_custom_call.1} parent=1 // pred_fallthru
      _
    // Predicated region
    $region14: #{tpu_custom_call.1} parent=1 // pred_check
      _
    $region15: #{tpu_custom_call.1} parent=1 // pred_check_branch
      %41 = sbr.rel (0) target = $region17
    $region16: #{tpu_custom_call.1} parent=1 // pred_region
      _
    $region17: #{tpu_custom_call.1} parent=1 // pred_fallthru
      _
    // Predicated region
    $region18: #{tpu_custom_call.1} parent=1 // pred_check
      _
    $region19: #{tpu_custom_call.1} parent=1 // pred_check_branch
      %43 = sbr.rel (0) target = $region21
    $region20: #{tpu_custom_call.1} parent=1 // pred_region
      _
    $region21: #{tpu_custom_call.1} parent=1 // pred_fallthru
      _
    // Predicated region
    $region22: #{tpu_custom_call.1} parent=1 // pred_check
      _
    $region23: #{tpu_custom_call.1} parent=1 // pred_check_branch
      %45 = sbr.rel (0) target = $region25
    $region24: #{tpu_custom_call.1} parent=1 // pred_region
      _
    $region25: #{tpu_custom_call.1} parent=1 // pred_fallthru
      _
    // Predicated region
    $region26: #{tpu_custom_call.1} parent=1 // pred_check
      _
    $region27: #{tpu_custom_call.1} parent=1 // pred_check_branch
      %47 = sbr.rel (0) target = $region29
    $region28: #{tpu_custom_call.1} parent=1 // pred_region
      _
    $region29: #{tpu_custom_call.1} parent=1 // pred_fallthru
      _
    // Predicated region
    $region30: #{tpu_custom_call.1} parent=1 // pred_check
      _
    $region31: #{tpu_custom_call.1} parent=1 // pred_check_branch
      %49 = sbr.rel (0) target = $region33
    $region32: #{tpu_custom_call.1} parent=1 // pred_region
      _
    $region33: #{tpu_custom_call.1} parent=1 // pred_fallthru
      _
    // Predicated region
    $region34: #{tpu_custom_call.1} parent=1 // pred_check
      _
    $region35: #{tpu_custom_call.1} parent=1 // pred_check_branch
      %51 = sbr.rel (0) target = $region37
    $region36: #{tpu_custom_call.1} parent=1 // pred_region
      _
    $region37: #{tpu_custom_call.1} parent=1 // pred_fallthru
      _
    // Predicated region
    $region38: #{tpu_custom_call.1} parent=1 // pred_check
      _
    $region39: #{tpu_custom_call.1} parent=1 // pred_check_branch
      %53 = sbr.rel (0) target = $region41
    $region40: #{tpu_custom_call.1} parent=1 // pred_region
      _
    $region41: #{tpu_custom_call.1} parent=1 // pred_fallthru
      _
    // Predicated region
    $region42: #{tpu_custom_call.1} parent=1 // pred_check
      _
    $region43: #{tpu_custom_call.1} parent=1 // pred_check_branch
      %55 = sbr.rel (0) target = $region45
    $region44: #{tpu_custom_call.1} parent=1 // pred_region
      _
    $region45: #{tpu_custom_call.1} parent=1 // pred_fallthru
      _
    // Predicated region
    $region46: #{tpu_custom_call.1} parent=1 // pred_check
      _
    $region47: #{tpu_custom_call.1} parent=1 // pred_check_branch
      %57 = sbr.rel (0) target = $region49
    $region48: #{tpu_custom_call.1} parent=1 // pred_region
      _
    $region49: #{tpu_custom_call.1} parent=1 // pred_fallthru
      _
    // Predicated region
    $region50: #{tpu_custom_call.1} parent=1 // pred_check
      _
    $region51: #{tpu_custom_call.1} parent=1 // pred_check_branch
      %59 = sbr.rel (0) target = $region53
    $region52: #{tpu_custom_call.1} parent=1 // pred_region
      _
    $region53: #{tpu_custom_call.1} parent=1 // pred_fallthru
      _
    // Predicated region
    $region54: #{tpu_custom_call.1} parent=1 // pred_check
      _
    $region55: #{tpu_custom_call.1} parent=1 // pred_check_branch
      %61 = sbr.rel (0) target = $region57
    $region56: #{tpu_custom_call.1} parent=1 // pred_region
      _
    $region57: #{tpu_custom_call.1} parent=1 // pred_fallthru
      _
    // Predicated region
    $region58: #{tpu_custom_call.1} parent=1 // pred_check
      _
    $region59: #{tpu_custom_call.1} parent=1 // pred_check_branch
      %63 = sbr.rel (0) target = $region61
    $region60: #{tpu_custom_call.1} parent=1 // pred_region
      %65 = vsyncadd [#allocation8], 0
      %s67 = sshll.u32 %s14, 4
      %s68 = int_to_ptr.vmem [resolvable:$true] %s67
      %70 = dma.vmem_to_smem %s68, 16, [#allocation7], [#allocation8]
    $region61: #{tpu_custom_call.1} parent=1 // pred_fallthru
      _
    // Predicated region
    $region62: #{tpu_custom_call.1} parent=1 // pred_check
      _
    $region63: #{tpu_custom_call.1} parent=1 // pred_check_branch
      %72 = sbr.rel (0) target = $region65
    $region64: #{tpu_custom_call.1} parent=1 // pred_region
      _
    $region65: #{tpu_custom_call.1} parent=1 // pred_fallthru
      _
    // Predicated region
    $region66: #{tpu_custom_call.1} parent=1 // pred_check
      _
    $region67: #{tpu_custom_call.1} parent=1 // pred_check_branch
      %74 = sbr.rel (0) target = $region69
    $region68: #{tpu_custom_call.1} parent=1 // pred_region
      _
    $region69: #{tpu_custom_call.1} parent=1 // pred_fallthru
      _
    // Predicated region
    $region70: #{tpu_custom_call.1} parent=1 // pred_check
      _
    $region71: #{tpu_custom_call.1} parent=1 // pred_check_branch
      %76 = sbr.rel (0) target = $region73
    $region72: #{tpu_custom_call.1} parent=1 // pred_region
      %78 = dma.done [#allocation6], 16
    $region73: #{tpu_custom_call.1} parent=1 // pred_fallthru
      _
    // Predicated region
    $region74: #{tpu_custom_call.1} parent=1 // pred_check
      _
    $region75: #{tpu_custom_call.1} parent=1 // pred_check_branch
      %80 = sbr.rel (0) target = $region77
    $region76: #{tpu_custom_call.1} parent=1 // pred_region
      %82 = dma.done [#allocation8], 16
    $region77: #{tpu_custom_call.1} parent=1 // pred_fallthru
      _
    %83 = sfence
    %v85 = vld [vmem:[%s0] sm:$0xff]
    %v86 = vpack.c.bf16 %v85, %v85
    %v87 = vld [vmem:[%s4] sm:$0xf]
    %v88 = vld [vmem:[%s4 + $0x4] sm:$0xf]
    %v89 = vld [vmem:[%s5] sm:$0x1]
    %v91 = vperm.slane %v89, 0
    %v95 = vunpack.c.l.b16 %v87
    %v96 = vunpack.c.l.b16 %v88
    %v97 = vpack.c.b16 %v96, %v95
    %vm99 = vcmask 130048
    %v101 = vsel %vm99, %v86, 0
    %103 = vmatpush.bf16.msra.mxu0 0
    %104 = vmatpush.bf16.msra.mxu0 0
    %105 = vmatpush.bf16.msra.mxu0 0
    %106 = vmatpush.bf16.msra.mxu0 0
    %107 = vmatpush.bf16.msra.mxu0 0
    %108 = vmatpush.bf16.msra.mxu0 0
    %109 = vmatpush.bf16.msra.mxu0 0
    %110 = vmatpush.bf16.msra.mxu0 %v97
    %111 = vmatmul.bf16.gmra.mxu0 %v101
    %v112 = vpop.f32.mrf.mxu0
    %v113 = vadd.f32 %v91, %v112
    %v114 = vpop.f32.mrf.mxu0
    %115 = vdwg.mxu0
    %v116 = vmax.f32 %v113, 0.0
    %s117 = sld [smem:[#allocation4]]
    %v118 = vld [vmem:[%s1] sm:$0xff]
    %v119 = vld [vmem:[%s1 + $0x8] sm:$0xff]
    %v120 = vstv %s117
    %v121 = vmul.f32 %v120, %v118
    %v122 = vmul.f32 %v120, %v119
    %s123 = sld [smem:[#allocation4 + $0x1]]
    %s124 = scalar_lea.vmem %s1, 16
    %v125 = vld [vmem:[%s124] sm:$0xff]
    %v126 = vld [vmem:[%s124 + $0x8] sm:$0xff]
    %v127 = vstv %s123
    %v128 = vmul.f32 %v127, %v125
    %v129 = vmul.f32 %v127, %v126
    %v130 = vadd.f32 %v121, %v128
    %v131 = vadd.f32 %v122, %v129
    %s132 = sld [smem:[#allocation4 + $0x2]]
    %s133 = scalar_lea.vmem %s1, 32
    %v134 = vld [vmem:[%s133] sm:$0xff]
    %v135 = vld [vmem:[%s133 + $0x8] sm:$0xff]
    %v136 = vstv %s132
    %v137 = vmul.f32 %v136, %v134
    %v138 = vmul.f32 %v136, %v135
    %v139 = vadd.f32 %v130, %v137
    %v140 = vadd.f32 %v131, %v138
    %s141 = sld [smem:[#allocation4 + $0x3]]
    %s142 = scalar_lea.vmem %s1, 48
    %v143 = vld [vmem:[%s142] sm:$0xff]
    %v144 = vld [vmem:[%s142 + $0x8] sm:$0xff]
    %v145 = vstv %s141
    %v146 = vmul.f32 %v145, %v143
    %v147 = vmul.f32 %v145, %v144
    %v148 = vadd.f32 %v139, %v146
    %v149 = vadd.f32 %v140, %v147
    %s150 = sld [smem:[#allocation4 + $0x4]]
    %s151 = scalar_lea.vmem %s1, 64
    %v152 = vld [vmem:[%s151] sm:$0xff]
    %v153 = vld [vmem:[%s151 + $0x8] sm:$0xff]
    %v154 = vstv %s150
    %v155 = vmul.f32 %v154, %v152
    %v156 = vmul.f32 %v154, %v153
    %v157 = vadd.f32 %v148, %v155
    %v158 = vadd.f32 %v149, %v156
    %s159 = sld [smem:[#allocation4 + $0x5]]
    %s160 = scalar_lea.vmem %s1, 80
    %v161 = vld [vmem:[%s160] sm:$0xff]
    %v162 = vld [vmem:[%s160 + $0x8] sm:$0xff]
    %v163 = vstv %s159
    %v164 = vmul.f32 %v163, %v161
    %v165 = vmul.f32 %v163, %v162
    %v166 = vadd.f32 %v157, %v164
    %v167 = vadd.f32 %v158, %v165
    %s168 = sld [smem:[#allocation4 + $0x6]]
    %s169 = scalar_lea.vmem %s1, 96
    %v170 = vld [vmem:[%s169] sm:$0xff]
    %v171 = vld [vmem:[%s169 + $0x8] sm:$0xff]
    %v172 = vstv %s168
    %v173 = vmul.f32 %v172, %v170
    %v174 = vmul.f32 %v172, %v171
    %v175 = vadd.f32 %v166, %v173
    %v176 = vadd.f32 %v167, %v174
    %s177 = sld [smem:[#allocation4 + $0x7]]
    %s178 = scalar_lea.vmem %s1, 112
    %v179 = vld [vmem:[%s178] sm:$0xff]
    %v180 = vld [vmem:[%s178 + $0x8] sm:$0xff]
    %v181 = vstv %s177
    %v182 = vmul.f32 %v181, %v179
    %v183 = vmul.f32 %v181, %v180
    %v184 = vadd.f32 %v175, %v182
    %v185 = vadd.f32 %v176, %v183
    %s186 = sld [smem:[#allocation4 + $0x8]]
    %s187 = scalar_lea.vmem %s1, 128
    %v188 = vld [vmem:[%s187] sm:$0xff]
    %v189 = vld [vmem:[%s187 + $0x8] sm:$0xff]
    %v190 = vstv %s186
    %v191 = vmul.f32 %v190, %v188
    %v192 = vmul.f32 %v190, %v189
    %v193 = vadd.f32 %v184, %v191
    %v194 = vadd.f32 %v185, %v192
    %s195 = sld [smem:[#allocation2]]
    %v196 = vstv %s195
    %v197 = vadd.f32 %v193, %v196
    %v198 = vadd.f32 %v194, %v196
    %v199 = vmax.f32 %v197, 0.0
    %v200 = vmax.f32 %v198, 0.0
    %v201 = vpack.c.bf16 %v199, %v199
    %v202 = vpack.c.bf16 %v200, %v200
    %v203 = vld [vmem:[%s6] sm:$0xf]
    %v204 = vld [vmem:[%s6 + $0x4] sm:$0xf]
    %v205 = vld [vmem:[%s6 + $0x8] sm:$0xf]
    %v206 = vld [vmem:[%s6 + $0xc] sm:$0xf]
    %v207 = vld [vmem:[%s6 + $0x10] sm:$0xf]
    %v208 = vld [vmem:[%s6 + $0x14] sm:$0xf]
    %v209 = vld [vmem:[%s6 + $0x18] sm:$0xf]
    %v210 = vld [vmem:[%s6 + $0x1c] sm:$0xf]
    %v211 = vld [vmem:[%s6 + $0x20] sm:$0xf]
    %v212 = vld [vmem:[%s6 + $0x24] sm:$0xf]
    %v213 = vld [vmem:[%s6 + $0x28] sm:$0xf]
    %v214 = vld [vmem:[%s6 + $0x2c] sm:$0xf]
    %v215 = vld [vmem:[%s6 + $0x30] sm:$0xf]
    %v216 = vld [vmem:[%s6 + $0x34] sm:$0xf]
    %v217 = vld [vmem:[%s6 + $0x38] sm:$0xf]
    %v218 = vld [vmem:[%s6 + $0x3c] sm:$0xf]
    %v219 = vld [vmem:[%s6 + $0x40] sm:$0xf]
    %v220 = vld [vmem:[%s6 + $0x44] sm:$0xf]
    %v221 = vld [vmem:[%s6 + $0x48] sm:$0xf]
    %v222 = vld [vmem:[%s6 + $0x4c] sm:$0xf]
    %v223 = vld [vmem:[%s6 + $0x50] sm:$0xf]
    %v224 = vld [vmem:[%s6 + $0x54] sm:$0xf]
    %v225 = vld [vmem:[%s6 + $0x58] sm:$0xf]
    %v226 = vld [vmem:[%s6 + $0x5c] sm:$0xf]
    %v227 = vld [vmem:[%s6 + $0x60] sm:$0xf]
    %v228 = vld [vmem:[%s6 + $0x64] sm:$0xf]
    %v229 = vld [vmem:[%s6 + $0x68] sm:$0xf]
    %v230 = vld [vmem:[%s6 + $0x6c] sm:$0xf]
    %v231 = vld [vmem:[%s6 + $0x70] sm:$0xf]
    %v232 = vld [vmem:[%s6 + $0x74] sm:$0xf]
    %v233 = vld [vmem:[%s6 + $0x78] sm:$0xf]
    %v234 = vld [vmem:[%s6 + $0x7c] sm:$0xf]
    %v235 = vld [vmem:[%s8] sm:$0x1]
    %v237 = vperm.slane %v235, 0
    %v271 = vunpack.c.l.b16 %v203
    %v272 = vunpack.c.l.b16 %v204
    %v273 = vunpack.c.l.b16 %v205
    %v274 = vunpack.c.l.b16 %v206
    %v275 = vunpack.c.l.b16 %v207
    %v276 = vunpack.c.l.b16 %v208
    %v277 = vunpack.c.l.b16 %v209
    %v278 = vunpack.c.l.b16 %v210
    %v279 = vunpack.c.l.b16 %v211
    %v280 = vunpack.c.l.b16 %v212
    %v281 = vunpack.c.l.b16 %v213
    %v282 = vunpack.c.l.b16 %v214
    %v283 = vunpack.c.l.b16 %v215
    %v284 = vunpack.c.l.b16 %v216
    %v285 = vunpack.c.l.b16 %v217
    %v286 = vunpack.c.l.b16 %v218
    %v287 = vunpack.c.l.b16 %v219
    %v288 = vunpack.c.l.b16 %v220
    %v289 = vunpack.c.l.b16 %v221
    %v290 = vunpack.c.l.b16 %v222
    %v291 = vunpack.c.l.b16 %v223
    %v292 = vunpack.c.l.b16 %v224
    %v293 = vunpack.c.l.b16 %v225
    %v294 = vunpack.c.l.b16 %v226
    %v295 = vunpack.c.l.b16 %v227
    %v296 = vunpack.c.l.b16 %v228
    %v297 = vunpack.c.l.b16 %v229
    %v298 = vunpack.c.l.b16 %v230
    %v299 = vunpack.c.l.b16 %v231
    %v300 = vunpack.c.l.b16 %v232
    %v301 = vunpack.c.l.b16 %v233
    %v302 = vunpack.c.l.b16 %v234
    %v303 = vpack.c.b16 %v272, %v271
    %v304 = vpack.c.b16 %v274, %v273
    %v305 = vpack.c.b16 %v276, %v275
    %v306 = vpack.c.b16 %v278, %v277
    %v307 = vpack.c.b16 %v280, %v279
    %v308 = vpack.c.b16 %v282, %v281
    %v309 = vpack.c.b16 %v284, %v283
    %v310 = vpack.c.b16 %v286, %v285
    %v311 = vpack.c.b16 %v288, %v287
    %v312 = vpack.c.b16 %v290, %v289
    %v313 = vpack.c.b16 %v292, %v291
    %v314 = vpack.c.b16 %v294, %v293
    %v315 = vpack.c.b16 %v296, %v295
    %v316 = vpack.c.b16 %v298, %v297
    %v317 = vpack.c.b16 %v300, %v299
    %v318 = vpack.c.b16 %v302, %v301
    %335 = vmatpush.bf16.msra.mxu0 %v310
    %336 = vmatpush.bf16.msra.mxu0 %v309
    %337 = vmatpush.bf16.msra.mxu0 %v308
    %338 = vmatpush.bf16.msra.mxu0 %v307
    %339 = vmatpush.bf16.msra.mxu0 %v306
    %340 = vmatpush.bf16.msra.mxu0 %v305
    %341 = vmatpush.bf16.msra.mxu0 %v304
    %342 = vmatpush.bf16.msra.mxu0 %v303
    %343 = vmatmul.bf16.gmra.mxu0 %v201
    %v344 = vpop.f32.mrf.mxu0
    %v345 = vadd.f32 %v237, %v344
    %v346 = vpop.f32.mrf.mxu0
    %347 = vdwg.mxu0
    %348 = vmatpush.bf16.msra.mxu0 %v318
    %349 = vmatpush.bf16.msra.mxu0 %v317
    %350 = vmatpush.bf16.msra.mxu0 %v316
    %351 = vmatpush.bf16.msra.mxu0 %v315
    %352 = vmatpush.bf16.msra.mxu0 %v314
    %353 = vmatpush.bf16.msra.mxu0 %v313
    %354 = vmatpush.bf16.msra.mxu0 %v312
    %355 = vmatpush.bf16.msra.mxu0 %v311
    %356 = vmatmul.bf16.gmra.mxu0 %v202
    %v357 = vpop.f32.mrf.mxu0
    %v358 = vadd.f32 %v345, %v357
    %v359 = vpop.f32.mrf.mxu0
    %360 = vdwg.mxu0
    %v361 = vld [vmem:[%s7] sm:$0xf]
    %v362 = vld [vmem:[%s7 + $0x4] sm:$0xf]
    %v363 = vld [vmem:[%s7 + $0x8] sm:$0xf]
    %v364 = vld [vmem:[%s7 + $0xc] sm:$0xf]
    %v365 = vld [vmem:[%s9] sm:$0x1]
    %v370 = vunpack.c.l.b16 %v361
    %v371 = vunpack.c.l.b16 %v362
    %v372 = vunpack.c.l.b16 %v363
    %v373 = vunpack.c.l.b16 %v364
    %v374 = vpack.c.b16 %v371, %v370
    %v375 = vpack.c.b16 %v373, %v372
    %vm378 = vcmask 261120
    %v380 = vsel %vm378, 0, 0
    %382 = vmatpush.bf16.msra.mxu0 0
    %383 = vmatpush.bf16.msra.mxu0 0
    %384 = vmatpush.bf16.msra.mxu0 0
    %385 = vmatpush.bf16.msra.mxu0 0
    %386 = vmatpush.bf16.msra.mxu0 0
    %387 = vmatpush.bf16.msra.mxu0 0
    %388 = vmatpush.bf16.msra.mxu0 %v375
    %389 = vmatpush.bf16.msra.mxu0 %v374
    %390 = vmatmul.bf16.gmra.mxu0 %v380
    %v391 = vpop.f32.mrf.mxu0
    %v392 = vadd.f32 %v365, %v391
    %v393 = vpop.f32.mrf.mxu0
    %394 = vdwg.mxu0
    %v395 = vadd.f32 %v358, %v392
    %v396 = vxor.u32 %v395, 2147483648
    %v397 = vmul.f32 %v396, 1.442695
    %v398 = vpow.pop %v397
    %v399 = vadd.f32 %v398, 1.0
    %v400 = vrcp.pop %v399
    %v401 = vmul.f32 %v399, %v400
    %v402 = vsub.f32 1.0, %v401
    %v403 = vmul.f32 %v400, %v402
    %v404 = vadd.f32 %v400, %v403
    %vm405 = vweird.f32 %v399
    %vm406 = vweird.f32 %v400
    %vm407 = vmor %vm405, %vm406
    %v408 = vsel %vm407, %v400, %v404
    %v409 = vand.u32 2147483647, %v399
    %vm410 = vcmp.eq.f32.partialorder %v409, 8.507059e+37
    %v411 = vand.u32 %v399, 2147483648
    %v412 = vor.u32 1.1754944e-38, %v411
    %v413 = vsel %vm410, %v412, %v408
    %v414 = vmul.f32 1.0, %v413
    %416 = vrot.lane.b32.xlu0 %v392, 64
    %v417 = vpop.permute.xlu0 %416
    %v419 = vmul.f32 %v414, %v417
    %421 = vrot.lane.b32.xlu0 %v419, 64
    %v422 = vpop.permute.xlu0 %421
    %v424 = vadd.f32 %v358, %v422
    %v425 = vtanh.pop %v424
    %v426 = vsub.f32 1.0, %v414
    %428 = vrot.lane.b32.xlu0 %v425, 96
    %v429 = vpop.permute.xlu0 %428
    %v431 = vmul.f32 %v426, %v429
    %v432 = vmul.f32 %v414, 0.0
    %v433 = vadd.f32 %v431, %v432
    %v434 = vpack.c.bf16 %v433, %v433
    %436 = vrot.lane.b32.xlu0 %v434, 96
    %v437 = vpop.permute.xlu0 %436
    %v439 = vsel %vm378, %v437, 0
    %441 = vmatpush.bf16.msra.mxu0 0
    %442 = vmatpush.bf16.msra.mxu0 0
    %443 = vmatpush.bf16.msra.mxu0 0
    %444 = vmatpush.bf16.msra.mxu0 0
    %445 = vmatpush.bf16.msra.mxu0 0
    %446 = vmatpush.bf16.msra.mxu0 0
    %447 = vmatpush.bf16.msra.mxu0 %v375
    %448 = vmatpush.bf16.msra.mxu0 %v374
    %449 = vmatmul.bf16.gmra.mxu0 %v439
    %v450 = vpop.f32.mrf.mxu0
    %v451 = vadd.f32 %v365, %v450
    %v452 = vpop.f32.mrf.mxu0
    %453 = vdwg.mxu0
    %v455 = vrot.slane %v451, 7
    %v457 = vadd.f32 %v358, %v455
    %v458 = vxor.u32 %v457, 2147483648
    %v459 = vmul.f32 %v458, 1.442695
    %v460 = vpow.pop %v459
    %v461 = vadd.f32 %v460, 1.0
    %v462 = vrcp.pop %v461
    %v463 = vmul.f32 %v461, %v462
    %v464 = vsub.f32 1.0, %v463
    %v465 = vmul.f32 %v462, %v464
    %v466 = vadd.f32 %v462, %v465
    %vm467 = vweird.f32 %v461
    %vm468 = vweird.f32 %v462
    %vm469 = vmor %vm467, %vm468
    %v470 = vsel %vm469, %v462, %v466
    %v471 = vand.u32 2147483647, %v461
    %vm472 = vcmp.eq.f32.partialorder %v471, 8.507059e+37
    %v473 = vand.u32 %v461, 2147483648
    %v474 = vor.u32 1.1754944e-38, %v473
    %v475 = vsel %vm472, %v474, %v470
    %v476 = vmul.f32 1.0, %v475
    %477 = vrot.lane.b32.xlu0 %v455, 64
    %v478 = vpop.permute.xlu0 %477
    %v480 = vmul.f32 %v476, %v478
    %482 = vrot.lane.b32.xlu0 %v480, 64
    %v483 = vpop.permute.xlu0 %482
    %v485 = vadd.f32 %v358, %v483
    %v486 = vtanh.pop %v485
    %v487 = vsub.f32 1.0, %v476
    %489 = vrot.lane.b32.xlu0 %v486, 96
    %v490 = vpop.permute.xlu0 %489
    %v492 = vmul.f32 %v487, %v490
    %v494 = vrot.slane %v433, 7
    %v496 = vmul.f32 %v476, %v494
    %v497 = vadd.f32 %v492, %v496
    %v498 = vpack.c.bf16 %v497, %v497
    %v500 = vshrl.u32 %v498, 16
    %502 = vrot.lane.b32.xlu0 %v500, 96
    %v503 = vpop.permute.xlu0 %502
    %v505 = vsel %vm378, %v503, 0
    %507 = vmatpush.bf16.msra.mxu0 0
    %508 = vmatpush.bf16.msra.mxu0 0
    %509 = vmatpush.bf16.msra.mxu0 0
    %510 = vmatpush.bf16.msra.mxu0 0
    %511 = vmatpush.bf16.msra.mxu0 0
    %512 = vmatpush.bf16.msra.mxu0 0
    %513 = vmatpush.bf16.msra.mxu0 %v375
    %514 = vmatpush.bf16.msra.mxu0 %v374
    %515 = vmatmul.bf16.gmra.mxu0 %v505
    %v516 = vpop.f32.mrf.mxu0
    %v517 = vadd.f32 %v365, %v516
    %v518 = vpop.f32.mrf.mxu0
    %519 = vdwg.mxu0
    %v521 = vrot.slane %v517, 6
    %v523 = vadd.f32 %v358, %v521
    %v524 = vxor.u32 %v523, 2147483648
    %v525 = vmul.f32 %v524, 1.442695
    %v526 = vpow.pop %v525
    %v527 = vadd.f32 %v526, 1.0
    %v528 = vrcp.pop %v527
    %v529 = vmul.f32 %v527, %v528
    %v530 = vsub.f32 1.0, %v529
    %v531 = vmul.f32 %v528, %v530
    %v532 = vadd.f32 %v528, %v531
    %vm533 = vweird.f32 %v527
    %vm534 = vweird.f32 %v528
    %vm535 = vmor %vm533, %vm534
    %v536 = vsel %vm535, %v528, %v532
    %v537 = vand.u32 2147483647, %v527
    %vm538 = vcmp.eq.f32.partialorder %v537, 8.507059e+37
    %v539 = vand.u32 %v527, 2147483648
    %v540 = vor.u32 1.1754944e-38, %v539
    %v541 = vsel %vm538, %v540, %v536
    %v542 = vmul.f32 1.0, %v541
    %543 = vrot.lane.b32.xlu0 %v521, 64
    %v544 = vpop.permute.xlu0 %543
    %v546 = vmul.f32 %v542, %v544
    %548 = vrot.lane.b32.xlu0 %v546, 64
    %v549 = vpop.permute.xlu0 %548
    %v551 = vadd.f32 %v358, %v549
    %v552 = vtanh.pop %v551
    %v553 = vsub.f32 1.0, %v542
    %555 = vrot.lane.b32.xlu0 %v552, 96
    %v556 = vpop.permute.xlu0 %555
    %v558 = vmul.f32 %v553, %v556
    %v560 = vrot.slane %v497, 7
    %v562 = vmul.f32 %v542, %v560
    %v563 = vadd.f32 %v558, %v562
    %v564 = vpack.c.bf16 %v563, %v563
    %v566 = vrot.slane %v564, 1
    %567 = vrot.lane.b32.xlu0 %v566, 96
    %v568 = vpop.permute.xlu0 %567
    %v570 = vsel %vm378, %v568, 0
    %572 = vmatpush.bf16.msra.mxu0 0
    %573 = vmatpush.bf16.msra.mxu0 0
    %574 = vmatpush.bf16.msra.mxu0 0
    %575 = vmatpush.bf16.msra.mxu0 0
    %576 = vmatpush.bf16.msra.mxu0 0
    %577 = vmatpush.bf16.msra.mxu0 0
    %578 = vmatpush.bf16.msra.mxu0 %v375
    %579 = vmatpush.bf16.msra.mxu0 %v374
    %580 = vmatmul.bf16.gmra.mxu0 %v570
    %v581 = vpop.f32.mrf.mxu0
    %v582 = vadd.f32 %v365, %v581
    %v583 = vpop.f32.mrf.mxu0
    %584 = vdwg.mxu0
    %v586 = vrot.slane %v582, 5
    %v588 = vadd.f32 %v358, %v586
    %v589 = vxor.u32 %v588, 2147483648
    %v590 = vmul.f32 %v589, 1.442695
    %v591 = vpow.pop %v590
    %v592 = vadd.f32 %v591, 1.0
    %v593 = vrcp.pop %v592
    %v594 = vmul.f32 %v592, %v593
    %v595 = vsub.f32 1.0, %v594
    %v596 = vmul.f32 %v593, %v595
    %v597 = vadd.f32 %v593, %v596
    %vm598 = vweird.f32 %v592
    %vm599 = vweird.f32 %v593
    %vm600 = vmor %vm598, %vm599
    %v601 = vsel %vm600, %v593, %v597
    %v602 = vand.u32 2147483647, %v592
    %vm603 = vcmp.eq.f32.partialorder %v602, 8.507059e+37
    %v604 = vand.u32 %v592, 2147483648
    %v605 = vor.u32 1.1754944e-38, %v604
    %v606 = vsel %vm603, %v605, %v601
    %v607 = vmul.f32 1.0, %v606
    %608 = vrot.lane.b32.xlu0 %v586, 64
    %v609 = vpop.permute.xlu0 %608
    %v611 = vmul.f32 %v607, %v609
    %613 = vrot.lane.b32.xlu0 %v611, 64
    %v614 = vpop.permute.xlu0 %613
    %v616 = vadd.f32 %v358, %v614
    %v617 = vtanh.pop %v616
    %v618 = vsub.f32 1.0, %v607
    %620 = vrot.lane.b32.xlu0 %v617, 96
    %v621 = vpop.permute.xlu0 %620
    %v623 = vmul.f32 %v618, %v621
    %v625 = vrot.slane %v563, 7
    %v627 = vmul.f32 %v607, %v625
    %v628 = vadd.f32 %v623, %v627
    %v629 = vpack.c.bf16 %v628, %v628
    %v631 = vshrl.u32 %v629, 16
    %v633 = vrot.slane %v631, 1
    %634 = vrot.lane.b32.xlu0 %v633, 96
    %v635 = vpop.permute.xlu0 %634
    %v637 = vsel %vm378, %v635, 0
    %639 = vmatpush.bf16.msra.mxu0 0
    %640 = vmatpush.bf16.msra.mxu0 0
    %641 = vmatpush.bf16.msra.mxu0 0
    %642 = vmatpush.bf16.msra.mxu0 0
    %643 = vmatpush.bf16.msra.mxu0 0
    %644 = vmatpush.bf16.msra.mxu0 0
    %645 = vmatpush.bf16.msra.mxu0 %v375
    %646 = vmatpush.bf16.msra.mxu0 %v374
    %647 = vmatmul.bf16.gmra.mxu0 %v637
    %v648 = vpop.f32.mrf.mxu0
    %v649 = vadd.f32 %v365, %v648
    %v650 = vpop.f32.mrf.mxu0
    %651 = vdwg.mxu0
    %v653 = vrot.slane %v649, 4
    %v655 = vadd.f32 %v358, %v653
    %v656 = vxor.u32 %v655, 2147483648
    %v657 = vmul.f32 %v656, 1.442695
    %v658 = vpow.pop %v657
    %v659 = vadd.f32 %v658, 1.0
    %v660 = vrcp.pop %v659
    %v661 = vmul.f32 %v659, %v660
    %v662 = vsub.f32 1.0, %v661
    %v663 = vmul.f32 %v660, %v662
    %v664 = vadd.f32 %v660, %v663
    %vm665 = vweird.f32 %v659
    %vm666 = vweird.f32 %v660
    %vm667 = vmor %vm665, %vm666
    %v668 = vsel %vm667, %v660, %v664
    %v669 = vand.u32 2147483647, %v659
    %vm670 = vcmp.eq.f32.partialorder %v669, 8.507059e+37
    %v671 = vand.u32 %v659, 2147483648
    %v672 = vor.u32 1.1754944e-38, %v671
    %v673 = vsel %vm670, %v672, %v668
    %v674 = vmul.f32 1.0, %v673
    %675 = vrot.lane.b32.xlu0 %v653, 64
    %v676 = vpop.permute.xlu0 %675
    %v678 = vmul.f32 %v674, %v676
    %680 = vrot.lane.b32.xlu0 %v678, 64
    %v681 = vpop.permute.xlu0 %680
    %v683 = vadd.f32 %v358, %v681
    %v684 = vtanh.pop %v683
    %v685 = vsub.f32 1.0, %v674
    %687 = vrot.lane.b32.xlu0 %v684, 96
    %v688 = vpop.permute.xlu0 %687
    %v690 = vmul.f32 %v685, %v688
    %v692 = vrot.slane %v628, 7
    %v694 = vmul.f32 %v674, %v692
    %v695 = vadd.f32 %v690, %v694
    %v696 = vpack.c.bf16 %v695, %v695
    %v698 = vrot.slane %v696, 2
    %699 = vrot.lane.b32.xlu0 %v698, 96
    %v700 = vpop.permute.xlu0 %699
    %v702 = vsel %vm378, %v700, 0
    %704 = vmatpush.bf16.msra.mxu0 0
    %705 = vmatpush.bf16.msra.mxu0 0
    %706 = vmatpush.bf16.msra.mxu0 0
    %707 = vmatpush.bf16.msra.mxu0 0
    %708 = vmatpush.bf16.msra.mxu0 0
    %709 = vmatpush.bf16.msra.mxu0 0
    %710 = vmatpush.bf16.msra.mxu0 %v375
    %711 = vmatpush.bf16.msra.mxu0 %v374
    %712 = vmatmul.bf16.gmra.mxu0 %v702
    %v713 = vpop.f32.mrf.mxu0
    %v714 = vadd.f32 %v365, %v713
    %v715 = vpop.f32.mrf.mxu0
    %716 = vdwg.mxu0
    %v718 = vrot.slane %v714, 3
    %v720 = vadd.f32 %v358, %v718
    %v721 = vxor.u32 %v720, 2147483648
    %v722 = vmul.f32 %v721, 1.442695
    %v723 = vpow.pop %v722
    %v724 = vadd.f32 %v723, 1.0
    %v725 = vrcp.pop %v724
    %v726 = vmul.f32 %v724, %v725
    %v727 = vsub.f32 1.0, %v726
    %v728 = vmul.f32 %v725, %v727
    %v729 = vadd.f32 %v725, %v728
    %vm730 = vweird.f32 %v724
    %vm731 = vweird.f32 %v725
    %vm732 = vmor %vm730, %vm731
    %v733 = vsel %vm732, %v725, %v729
    %v734 = vand.u32 2147483647, %v724
    %vm735 = vcmp.eq.f32.partialorder %v734, 8.507059e+37
    %v736 = vand.u32 %v724, 2147483648
    %v737 = vor.u32 1.1754944e-38, %v736
    %v738 = vsel %vm735, %v737, %v733
    %v739 = vmul.f32 1.0, %v738
    %740 = vrot.lane.b32.xlu0 %v718, 64
    %v741 = vpop.permute.xlu0 %740
    %v743 = vmul.f32 %v739, %v741
    %745 = vrot.lane.b32.xlu0 %v743, 64
    %v746 = vpop.permute.xlu0 %745
    %v748 = vadd.f32 %v358, %v746
    %v749 = vtanh.pop %v748
    %v750 = vsub.f32 1.0, %v739
    %752 = vrot.lane.b32.xlu0 %v749, 96
    %v753 = vpop.permute.xlu0 %752
    %v755 = vmul.f32 %v750, %v753
    %v757 = vrot.slane %v695, 7
    %v759 = vmul.f32 %v739, %v757
    %v760 = vadd.f32 %v755, %v759
    %v761 = vpack.c.bf16 %v760, %v760
    %v763 = vshrl.u32 %v761, 16
    %v765 = vrot.slane %v763, 2
    %766 = vrot.lane.b32.xlu0 %v765, 96
    %v767 = vpop.permute.xlu0 %766
    %v769 = vsel %vm378, %v767, 0
    %771 = vmatpush.bf16.msra.mxu0 0
    %772 = vmatpush.bf16.msra.mxu0 0
    %773 = vmatpush.bf16.msra.mxu0 0
    %774 = vmatpush.bf16.msra.mxu0 0
    %775 = vmatpush.bf16.msra.mxu0 0
    %776 = vmatpush.bf16.msra.mxu0 0
    %777 = vmatpush.bf16.msra.mxu0 %v375
    %778 = vmatpush.bf16.msra.mxu0 %v374
    %779 = vmatmul.bf16.gmra.mxu0 %v769
    %v780 = vpop.f32.mrf.mxu0
    %v781 = vadd.f32 %v365, %v780
    %v782 = vpop.f32.mrf.mxu0
    %783 = vdwg.mxu0
    %v785 = vrot.slane %v781, 2
    %v787 = vadd.f32 %v358, %v785
    %v788 = vxor.u32 %v787, 2147483648
    %v789 = vmul.f32 %v788, 1.442695
    %v790 = vpow.pop %v789
    %v791 = vadd.f32 %v790, 1.0
    %v792 = vrcp.pop %v791
    %v793 = vmul.f32 %v791, %v792
    %v794 = vsub.f32 1.0, %v793
    %v795 = vmul.f32 %v792, %v794
    %v796 = vadd.f32 %v792, %v795
    %vm797 = vweird.f32 %v791
    %vm798 = vweird.f32 %v792
    %vm799 = vmor %vm797, %vm798
    %v800 = vsel %vm799, %v792, %v796
    %v801 = vand.u32 2147483647, %v791
    %vm802 = vcmp.eq.f32.partialorder %v801, 8.507059e+37
    %v803 = vand.u32 %v791, 2147483648
    %v804 = vor.u32 1.1754944e-38, %v803
    %v805 = vsel %vm802, %v804, %v800
    %v806 = vmul.f32 1.0, %v805
    %807 = vrot.lane.b32.xlu0 %v785, 64
    %v808 = vpop.permute.xlu0 %807
    %v810 = vmul.f32 %v806, %v808
    %812 = vrot.lane.b32.xlu0 %v810, 64
    %v813 = vpop.permute.xlu0 %812
    %v815 = vadd.f32 %v358, %v813
    %v816 = vtanh.pop %v815
    %v817 = vsub.f32 1.0, %v806
    %819 = vrot.lane.b32.xlu0 %v816, 96
    %v820 = vpop.permute.xlu0 %819
    %v822 = vmul.f32 %v817, %v820
    %v824 = vrot.slane %v760, 7
    %v826 = vmul.f32 %v806, %v824
    %v827 = vadd.f32 %v822, %v826
    %v828 = vpack.c.bf16 %v827, %v827
    %v830 = vrot.slane %v828, 3
    %831 = vrot.lane.b32.xlu0 %v830, 96
    %v832 = vpop.permute.xlu0 %831
    %v834 = vsel %vm378, %v832, 0
    %836 = vmatpush.bf16.msra.mxu0 0
    %837 = vmatpush.bf16.msra.mxu0 0
    %838 = vmatpush.bf16.msra.mxu0 0
    %839 = vmatpush.bf16.msra.mxu0 0
    %840 = vmatpush.bf16.msra.mxu0 0
    %841 = vmatpush.bf16.msra.mxu0 0
    %842 = vmatpush.bf16.msra.mxu0 %v375
    %843 = vmatpush.bf16.msra.mxu0 %v374
    %844 = vmatmul.bf16.gmra.mxu0 %v834
    %v845 = vpop.f32.mrf.mxu0
    %v846 = vadd.f32 %v365, %v845
    %v847 = vpop.f32.mrf.mxu0
    %848 = vdwg.mxu0
    %v850 = vrot.slane %v846, 1
    %v852 = vadd.f32 %v358, %v850
    %v853 = vxor.u32 %v852, 2147483648
    %v854 = vmul.f32 %v853, 1.442695
    %v855 = vpow.pop %v854
    %v856 = vadd.f32 %v855, 1.0
    %v857 = vrcp.pop %v856
    %v858 = vmul.f32 %v856, %v857
    %v859 = vsub.f32 1.0, %v858
    %v860 = vmul.f32 %v857, %v859
    %v861 = vadd.f32 %v857, %v860
    %vm862 = vweird.f32 %v856
    %vm863 = vweird.f32 %v857
    %vm864 = vmor %vm862, %vm863
    %v865 = vsel %vm864, %v857, %v861
    %v866 = vand.u32 2147483647, %v856
    %vm867 = vcmp.eq.f32.partialorder %v866, 8.507059e+37
    %v868 = vand.u32 %v856, 2147483648
    %v869 = vor.u32 1.1754944e-38, %v868
    %v870 = vsel %vm867, %v869, %v865
    %v871 = vmul.f32 1.0, %v870
    %872 = vrot.lane.b32.xlu0 %v850, 64
    %v873 = vpop.permute.xlu0 %872
    %v875 = vmul.f32 %v871, %v873
    %877 = vrot.lane.b32.xlu0 %v875, 64
    %v878 = vpop.permute.xlu0 %877
    %v880 = vadd.f32 %v358, %v878
    %v881 = vtanh.pop %v880
    %v882 = vsub.f32 1.0, %v871
    %884 = vrot.lane.b32.xlu0 %v881, 96
    %v885 = vpop.permute.xlu0 %884
    %v887 = vmul.f32 %v882, %v885
    %v889 = vrot.slane %v827, 7
    %v891 = vmul.f32 %v871, %v889
    %v892 = vadd.f32 %v887, %v891
    %v893 = vpack.c.bf16 %v116, %v116
    %v894 = vld [vmem:[%s10] sm:$0xf]
    %v895 = vld [vmem:[%s10 + $0x4] sm:$0xf]
    %v896 = vld [vmem:[%s10 + $0x8] sm:$0xf]
    %v897 = vld [vmem:[%s10 + $0xc] sm:$0xf]
    %v898 = vpack.c.bf16 %v892, %v892
    %v899 = vld [vmem:[%s11] sm:$0xf]
    %v900 = vld [vmem:[%s11 + $0x4] sm:$0xf]
    %v901 = vld [vmem:[%s11 + $0x8] sm:$0xf]
    %v902 = vld [vmem:[%s11 + $0xc] sm:$0xf]
    %v904 = vshrl.u32 %v898, 16
    %v906 = vrot.slane %v904, 3
    %907 = vrot.lane.b32.xlu0 %v906, 96
    %v908 = vpop.permute.xlu0 %907
    %v913 = vunpack.c.l.b16 %v899
    %v914 = vunpack.c.l.b16 %v900
    %v915 = vunpack.c.l.b16 %v901
    %v916 = vunpack.c.l.b16 %v902
    %v917 = vpack.c.b16 %v914, %v913
    %v918 = vpack.c.b16 %v916, %v915
    %v922 = vsel %vm378, %v908, 0
    %924 = vmatpush.bf16.msra.mxu0 0
    %925 = vmatpush.bf16.msra.mxu0 0
    %926 = vmatpush.bf16.msra.mxu0 0
    %927 = vmatpush.bf16.msra.mxu0 0
    %928 = vmatpush.bf16.msra.mxu0 0
    %929 = vmatpush.bf16.msra.mxu0 0
    %930 = vmatpush.bf16.msra.mxu0 %v918
    %931 = vmatpush.bf16.msra.mxu0 %v917
    %932 = vmatmul.bf16.gmra.mxu0 %v922
    %v933 = vpop.f32.mrf.mxu0
    %v934 = vadd.f32 0.0, %v933
    %v935 = vpop.f32.mrf.mxu0
    %936 = vdwg.mxu0
    %v937 = vperm.slane %v934, 0
    %v942 = vunpack.c.l.b16 %v894
    %v943 = vunpack.c.l.b16 %v895
    %v944 = vunpack.c.l.b16 %v896
    %v945 = vunpack.c.l.b16 %v897
    %v946 = vpack.c.b16 %v943, %v942
    %v947 = vpack.c.b16 %v945, %v944
    %v951 = vsel %vm378, %v893, 0
    %953 = vmatpush.bf16.msra.mxu0 0
    %954 = vmatpush.bf16.msra.mxu0 0
    %955 = vmatpush.bf16.msra.mxu0 0
    %956 = vmatpush.bf16.msra.mxu0 0
    %957 = vmatpush.bf16.msra.mxu0 0
    %958 = vmatpush.bf16.msra.mxu0 0
    %959 = vmatpush.bf16.msra.mxu0 %v947
    %960 = vmatpush.bf16.msra.mxu0 %v946
    %961 = vmatmul.bf16.gmra.mxu0 %v951
    %v962 = vpop.f32.mrf.mxu0
    %v963 = vadd.f32 %v937, %v962
    %v964 = vpop.f32.mrf.mxu0
    %965 = vdwg.mxu0
    %v966 = vld [vmem:[%s12] sm:$0x1]
    %v968 = vperm.slane %v966, 0
    %v970 = vadd.f32 %v963, %v968
    %v971 = vmax.f32 %v970, 0.0
    %v972 = vld [vmem:[%s13] sm:$0x1]
    %v973 = vperm.slane %v972, 0
    %v974 = vmul.f32 %v971, %v973
    %v975 = vsel %vm378, %v974, 0.0
    %976 = vadd.xlane.f32.xlu0 %v975
    %v977 = vpop.xlane.xlu0 %976
    %s978 = sld [smem:[#allocation7]]
    %v979 = vstv %s978
    %v980 = vadd.f32 %v977, %v979
    %v981 = vld [vmem:[%s13 + $0x1] sm:$0x1]
    %v982 = vperm.slane %v981, 0
    %v983 = vmul.f32 %v971, %v982
    %v984 = vsel %vm378, %v983, 0.0
    %985 = vadd.xlane.f32.xlu0 %v984
    %v986 = vpop.xlane.xlu0 %985
    %s987 = sld [smem:[#allocation7 + $0x1]]
    %v988 = vstv %s987
    %v989 = vadd.f32 %v986, %v988
    %v990 = vmul.f32 %v989, 0.1
    %v991 = vtanh.pop %v990
    %v992 = vmul.f32 %v991, 10.0
    %v993 = vperm.slane %v892, 7
    %995 = vrot.lane.b32.xlu0 %v993, 96
    %v996 = vpop.permute.xlu0 %995
    %v998 = vmul.f32 %v116, %v996
    %v999 = vsel %vm378, %v998, 0.0
    %1000 = vadd.xlane.f32.xlu0 %v999
    %v1001 = vpop.xlane.xlu0 %1000
    %v1002 = vmul.f32 %v1001, 0.17677669
    %v1003 = vrot.slane %v1002, 4
    %v1004 = vmax.f32 %v1002, %v1003
    %v1005 = vrot.slane %v1004, 2
    %v1006 = vmax.f32 %v1004, %v1005
    %v1007 = vrot.slane %v1006, 1
    %v1008 = vmax.f32 %v1006, %v1007
    %v1009 = vsub.f32 %v1002, %v1008
    %v1010 = vmul.f32 %v1009, 1.442695
    %v1011 = vpow.pop %v1010
    %v1012 = vrot.slane %v1011, 4
    %v1013 = vadd.f32 %v1011, %v1012
    %v1014 = vrot.slane %v1013, 2
    %v1015 = vadd.f32 %v1013, %v1014
    %v1016 = vrot.slane %v1015, 1
    %v1017 = vadd.f32 %v1015, %v1016
    %v1018 = vrcp.pop %v1017
    %v1019 = vmul.f32 %v1017, %v1018
    %v1020 = vsub.f32 1.0, %v1019
    %v1021 = vmul.f32 %v1018, %v1020
    %v1022 = vadd.f32 %v1018, %v1021
    %vm1023 = vweird.f32 %v1017
    %vm1024 = vweird.f32 %v1018
    %vm1025 = vmor %vm1023, %vm1024
    %v1026 = vsel %vm1025, %v1018, %v1022
    %v1027 = vand.u32 2147483647, %v1017
    %vm1028 = vcmp.eq.f32.partialorder %v1027, 8.507059e+37
    %v1029 = vand.u32 %v1017, 2147483648
    %v1030 = vor.u32 1.1754944e-38, %v1029
    %v1031 = vsel %vm1028, %v1030, %v1026
    %v1032 = vmul.f32 %v1011, %v1031
    %v1033 = vmul.f32 %v1032, %v116
    %v1034 = vsel %vm378, %v1033, 0.0
    %v1035 = vrot.slane %v1034, 4
    %v1036 = vadd.f32 %v1034, %v1035
    %v1037 = vrot.slane %v1036, 2
    %v1038 = vadd.f32 %v1036, %v1037
    %v1039 = vrot.slane %v1038, 1
    %v1040 = vadd.f32 %v1038, %v1039
    %v1041 = vld [vmem:[%s15] sm:$0x1]
    %v1043 = vrot.slane %v1041, 1
    %1044 = vrot.lane.b32.xlu0 %v1043, 32
    %v1045 = vpop.permute.xlu0 %1044
    %v1047 = vmul.f32 %v892, %v1045
    %v1048 = vld [vmem:[%s15 + $0x1] sm:$0x1]
    %v1049 = vmul.f32 %v1040, %v1048
    %v1051 = vrot.slane %v1049, 1
    %1052 = vrot.lane.b32.xlu0 %v1051, 32
    %v1053 = vpop.permute.xlu0 %1052
    %v1055 = vadd.f32 %v1047, %v1053
    %v1057 = vrot.slane %v1055, 7
    %1058 = vrot.lane.b32.xlu0 %v1057, 96
    %v1059 = vpop.permute.xlu0 %1058
    %vm1061 = vcmask 253952
    %v1062 = vsel %vm1061, %v1059, 0.0
    %1063 = vadd.xlane.f32.xlu0 %v1062
    %v1064 = vpop.xlane.xlu0 %1063
    %v1065 = vrot.slane %v1064, 4
    %v1066 = vadd.f32 %v1064, %v1065
    %v1067 = vrot.slane %v1066, 2
    %v1068 = vadd.f32 %v1066, %v1067
    %v1069 = vrot.slane %v1068, 1
    %v1070 = vadd.f32 %v1068, %v1069
    %s1071 = vtos %v1070
    %s1072 = sld [smem:[#allocation3]]
    %s1073 = sadd.f32 %s1071, %s1072
    %v1074 = vlaneseq
    %v1075 = vand.u32 %v1074, 127
    %vm1076 = vcmp.eq.s32.totalorder %v1075, 0
    %vm1077 = vcmp.eq.s32.totalorder %v1075, 1
    %vm1078 = vcmp.eq.s32.totalorder %v1075, 2
    %v1079 = vstv %s1073
    %v1080 = vsel %vm1078, %v1079, 0.0
    %v1081 = vsel %vm1077, %v992, %v1080
    %v1082 = vsel %vm1076, %v980, %v1081
    %1083 = vst [vmem:[#allocation9] sm:$0xff] %v1082
    // Predicated region
    $region78: #{tpu_custom_call.1} parent=1 // pred_check
      _
    $region79: #{tpu_custom_call.1} parent=1 // pred_check_branch
      %1085 = sbr.rel (0) target = $region81
    $region80: #{tpu_custom_call.1} parent=1 // pred_region
      %1087 = vsyncadd [#allocation5], 0
      %s1089 = sshll.u32 [#allocation9], 4
      %s1090 = int_to_ptr.vmem [resolvable:$true] %s1089
      %s1091 = sshll.u32 %s17, 4
      %s1092 = int_to_ptr.hbm [resolvable:$true] %s1091
      %1094 = dma.vmem_to_hbm [thread:$0]  %s1090, 128, %s1092, [#allocation5]
    $region81: #{tpu_custom_call.1} parent=1 // pred_fallthru
      _
    // Predicated region
    $region82: #{tpu_custom_call.1} parent=1 // pred_check
      _
    $region83: #{tpu_custom_call.1} parent=1 // pred_check_branch
      %1096 = sbr.rel (0) target = $region85
    $region84: #{tpu_custom_call.1} parent=1 // pred_region
      %1098 = dma.done [#allocation5], 128
    $region85: #{tpu_custom_call.1} parent=1 // pred_fallthru
      _
    %1099 = vsyncpa [#allocation5], 1
    %1100 = vsyncpa [#allocation6], 1
    %1101 = vsyncpa [#allocation8], 1

</llo_original>
